<compile_context>
chip_gen: v7x
topology: tpu7x:2x2x1
jax: 0.10.0
libtpu: 0.0.40
codegen_flags: <defaults>
</compile_context>

<pallas_src>
import functools
from typing import NamedTuple, Optional

import jax
import jax.numpy as jnp
import numpy as np
from jax import lax
from jax.experimental import pallas as pl
from jax.experimental.pallas import tpu as pltpu


# --------------------------------------------------------------------------------------
# Chip-dependent sizing helpers
# --------------------------------------------------------------------------------------
def _round_up(x: int, m: int) -> int:
    return ((x + m - 1) // m) * m


def _chip_generation() -> int:
    try:
        kind = jax.devices()[0].device_kind.lower()
    except Exception:
        return 0
    for g in (7, 6, 5, 4, 3):
        if f"v{g}" in kind:
            return g
    return 0


def _vmem_limit_bytes(gen: int) -> int:
    # v4/v5e/v6e have 128 MiB VMEM per core -> 96 MiB leaves headroom; v7x has 64 MiB
    # per core (and unknown chips are treated conservatively) -> 48 MiB.
    return (96 if gen in (4, 5, 6) else 48) * 1024 * 1024


def _default_token_tile(gen: int) -> int:
    return 512 if gen in (4, 5, 6) else 256


def _pick_token_tile(n_tok: int, gen: int, tn: Optional[int]) -> int:
    if tn is None:
        tn = _default_token_tile(gen)
    # Keep the tile a multiple of 128 (int8/bf16-friendly sublane tiling) and no larger
    # than the padded token count.
    tn = max(128, _round_up(min(tn, _round_up(n_tok, 128)), 128))
    if gen >= 7 and n_tok > 128 and -(-n_tok // tn) < 2:
        # v7x shards "parallel" grid axes across its 2 TensorCores: make sure there are at
        # least two grid steps so the second core is not idle.
        tn = min(tn, _round_up(-(-n_tok // 2), 128))
    return tn


# --------------------------------------------------------------------------------------
# Kernel
# --------------------------------------------------------------------------------------
def _quant_ada_ln_kernel(x_ref, wt_ref, params_ref, q_ref, scale_ref, *,
                         eps, use_int8_mxu, apply_affine, approx_recip):
    # ---- 1) SiLU + per-token dynamic int8 quantization of the conditioning input ----
    x = x_ref[...].astype(jnp.float32)                                       # (tn, d_in)
    s = x * jax.nn.sigmoid(x)                                                # SiLU (EUP)
    amax1 = jnp.maximum(jnp.max(jnp.abs(s), axis=-1, keepdims=True), 1e-8)   # (tn, 1)
    if approx_recip:
        inv_act = pl.reciprocal(amax1, approx=True) * 127.0
    else:
        inv_act = 127.0 / amax1                           # == 1 / act_scale (1/127 folded)
    q1 = jnp.clip(jnp.round(s * inv_act), -127.0, 127.0)  # int8 values held in f32

    # ---- 2) W8A8 linear with dynamic input scale, dequantized f32 output ----
    # Weight is pre-transposed to [d_in, d_out] (int8 on v5/v6 MXU, bf16 elsewhere) at
    # prepare time, so no in-kernel transpose / per-step cast is needed.
    if use_int8_mxu:
        acc = lax.dot_general(q1.astype(jnp.int8), wt_ref[...],
                              (((1,), (0,)), ((), ())),
                              preferred_element_type=jnp.int32).astype(jnp.float32)
    else:
        acc = lax.dot_general(q1.astype(jnp.bfloat16), wt_ref[...],
                              (((1,), (0,)), ((), ())),
                              preferred_element_type=jnp.float32)

    w_scale_eff = params_ref[0:1, :]     # (1, d_out) = per-channel weight scale / 127
    lin_bias = params_ref[1:2, :]        # (1, d_out)
    y = acc * amax1 * w_scale_eff + lin_bias          # == acc * act_scale * w_scale + bias

    # ---- 3) LayerNorm (centred two-pass; row sums on the nearly-idle MXU) + re-quant ----
    d_out = y.shape[-1]
    inv_d = 1.0 / d_out
    ones_col = jnp.ones((d_out, 1), jnp.float32)
    dot_dims = (((1,), (0,)), ((), ()))
    mean = lax.dot_general(y, ones_col, dot_dims,
                           preferred_element_type=jnp.float32) * inv_d       # (tn, 1)
    c = y - mean
    var = lax.dot_general(c * c, ones_col, dot_dims,
                          preferred_element_type=jnp.float32) * inv_d        # (tn, 1)
    ln = c * lax.rsqrt(var + eps)
    if apply_affine:     # statically skipped for the module's identity norm_weight/bias
        ln = ln * params_ref[2:3, :] + params_ref[3:4, :]

    amax2 = jnp.maximum(jnp.max(jnp.abs(ln), axis=-1, keepdims=True), 1e-8)  # (tn, 1)
    if approx_recip:
        inv_out = pl.reciprocal(amax2, approx=True) * 127.0
    else:
        inv_out = 127.0 / amax2
    q_ref[...] = jnp.clip(jnp.round(ln * inv_out), -127.0, 127.0).astype(jnp.int8)
    # Narrow per-row scale output: 4 bytes/token of HBM writeback (no lane broadcast).
    scale_ref[...] = amax2 * (1.0 / 127.0)


# --------------------------------------------------------------------------------------
# One-time weight preparation (hoisted out of the per-call path) + forward wrapper
# --------------------------------------------------------------------------------------
class PreparedQuantAdaLN(NamedTuple):
    wt: jax.Array        # (d_in, d_out), int8 (v5/v6 int8 MXU) or bf16 (exact for int8 values)
    params: jax.Array    # (2 or 4, d_out) f32: [w_scale/127, bias, (gamma, beta)]
    apply_affine: bool
    use_int8_mxu: bool
    eps: float


def prepare_quant_ada_layer_norm(wq, w_scale, bias, gamma=None, beta=None, *,
                                 eps=1e-5, use_int8_mxu=None) -> PreparedQuantAdaLN:
    """One-time prep (call at weight-load time and cache): transpose + narrow-cast the
    quantized weight, pack all per-channel vectors into one (rows, d_out) array, and fold
    the 1/127 dequant factor into the weight scale."""
    d_out, d_in = wq.shape
    gen = _chip_generation()
    if use_int8_mxu is None:
        use_int8_mxu = gen in (5, 6)   # v5e/v6e MXU takes int8; v7x/unknown -> bf16 path
    wt = jnp.asarray(wq).T
    wt = wt.astype(jnp.int8) if use_int8_mxu else wt.astype(jnp.bfloat16)

    apply_affine = (gamma is not None) or (beta is not None)
    rows = [jnp.asarray(w_scale, jnp.float32).reshape(1, d_out) * (1.0 / 127.0),
            jnp.asarray(bias, jnp.float32).reshape(1, d_out)]
    if apply_affine:
        g = jnp.ones((d_out,), jnp.float32) if gamma is None else jnp.asarray(gamma, jnp.float32)
        b = jnp.zeros((d_out,), jnp.float32) if beta is None else jnp.asarray(beta, jnp.float32)
        rows += [g.reshape(1, d_out), b.reshape(1, d_out)]
    params = jnp.concatenate(rows, axis=0)
    wt, params = jax.block_until_ready((wt, params))
    return PreparedQuantAdaLN(wt=wt, params=params, apply_affine=bool(apply_affine),
                              use_int8_mxu=bool(use_int8_mxu), eps=float(eps))


def quant_ada_layer_norm(x, prepared: PreparedQuantAdaLN, *, tn=None, approx_recip=False):
    """x: [N, d_in] (bf16/f32). Returns (int8 [N, d_out], f32 per-token scales [N, 1])."""
    n_tok, d_in = x.shape
    d_in_w, d_out = prepared.wt.shape
    assert d_in == d_in_w, (d_in, d_in_w)

    gen = _chip_generation()
    tn = _pick_token_tile(n_tok, gen, tn)
    n_tiles = -(-n_tok // tn)
    n_pad = n_tiles * tn
    if n_pad != n_tok:
        # Padded tail rows produce finite junk and are sliced off below.
        x = jnp.pad(x, ((0, n_pad - n_tok), (0, 0)))

    n_param_rows = prepared.params.shape[0]
    kernel = functools.partial(
        _quant_ada_ln_kernel, eps=prepared.eps, use_int8_mxu=prepared.use_int8_mxu,
        apply_affine=prepared.apply_affine, approx_recip=approx_recip)

    q_pad, scale_pad = pl.pallas_call(
        kernel,
        out_shape=(jax.ShapeDtypeStruct((n_pad, d_out), jnp.int8),
                   jax.ShapeDtypeStruct((n_pad, 1), jnp.float32)),
        grid_spec=pltpu.PrefetchScalarGridSpec(
            num_scalar_prefetch=0,
            grid=(n_tiles,),
            in_specs=[
                pl.BlockSpec((tn, d_in), lambda i: (i, 0)),            # token tile (pipelined)
                pl.BlockSpec((d_in, d_out), lambda i: (0, 0),          # resident weight,
                             pipeline_mode=pl.Buffered(1)),            #   single-buffered
                pl.BlockSpec((n_param_rows, d_out), lambda i: (0, 0),  # packed per-channel params,
                             pipeline_mode=pl.Buffered(1)),            #   single-buffered
            ],
            out_specs=(pl.BlockSpec((tn, d_out), lambda i: (i, 0)),
                       pl.BlockSpec((tn, 1), lambda i: (i, 0))),
        ),
        compiler_params=pltpu.CompilerParams(
            dimension_semantics=("parallel",),
            vmem_limit_bytes=_vmem_limit_bytes(gen)),
    )(x, prepared.wt, prepared.params)

    return q_pad[:n_tok], scale_pad[:n_tok]


# --------------------------------------------------------------------------------------
# Pure-JAX reference (mirrors the kernel math; faithful to the module semantics)
# --------------------------------------------------------------------------------------
def _reference(x, wq, w_scale, bias, gamma, beta, eps):
    xf = x.astype(jnp.float32)
    s = xf * jax.nn.sigmoid(xf)
    amax1 = jnp.maximum(jnp.max(jnp.abs(s), axis=-1, keepdims=True), 1e-8)
    q1 = jnp.clip(jnp.round(s * (127.0 / amax1)), -127.0, 127.0)
    acc = q1 @ wq.astype(jnp.float32).T                      # exact: integer-valued operands
    y = acc * amax1 * (w_scale.reshape(1, -1) * (1.0 / 127.0)) + bias.reshape(1, -1)
    mean = jnp.mean(y, axis=-1, keepdims=True)
    c = y - mean
    var = jnp.mean(c * c, axis=-1, keepdims=True)
    ln = c * lax.rsqrt(var + eps)
    ln = ln * gamma.reshape(1, -1) + beta.reshape(1, -1)
    amax2 = jnp.maximum(jnp.max(jnp.abs(ln), axis=-1, keepdims=True), 1e-8)
    q2 = jnp.clip(jnp.round(ln * (127.0 / amax2)), -127.0, 127.0).astype(jnp.int8)
    return q2, amax2 * (1.0 / 127.0)


if __name__ == "__main__":
    N, D_IN, D_OUT = 256, 128, 256
    EPS = 1e-5

    key = jax.random.PRNGKey(0)
    k_x, k_w, k_b, k_g, k_b2 = jax.random.split(key, 5)

    # Conditioning embedding (the `input` arg of forward).
    x = jax.random.normal(k_x, (N, D_IN), dtype=jnp.float32).astype(jnp.bfloat16)

    # Synthetic linear params (norm.linear: D_IN -> D_OUT), per-output-channel int8 quant.
    w = jax.random.normal(k_w, (D_OUT, D_IN), dtype=jnp.float32) * 0.05
    bias = jax.random.normal(k_b, (D_OUT,), dtype=jnp.float32) * 0.1
    w_amax = jnp.max(jnp.abs(w), axis=1, keepdims=True)
    w_scale = w_amax / 127.0
    wq = jnp.clip(jnp.round(w / w_scale), -127, 127).astype(jnp.int8)
    w_scale_vec = w_scale.reshape(D_OUT).astype(jnp.float32)

    # --- Module configuration: norm_weight = ones, norm_bias = zeros -> affine skipped. ---
    prepared = prepare_quant_ada_layer_norm(wq, w_scale_vec, bias, eps=EPS)
    q_out, scale_out = quant_ada_layer_norm(x, prepared)
    jax.block_until_ready((q_out, scale_out))

    ones = jnp.ones((D_OUT,), jnp.float32)
    zeros = jnp.zeros((D_OUT,), jnp.float32)
    q_ref, scale_ref = _reference(x, wq, w_scale_vec, bias, ones, zeros, EPS)
    assert q_out.shape == (N, D_OUT) and q_out.dtype == jnp.int8
    assert scale_out.shape == (N, 1) and scale_out.dtype == jnp.float32
    np.testing.assert_allclose(np.asarray(scale_out), np.asarray(scale_ref),
                               rtol=1e-3, atol=1e-6)
    max_diff = int(np.max(np.abs(np.asarray(q_out, np.int32) - np.asarray(q_ref, np.int32))))
    assert max_diff <= 1, f"int8 mismatch (identity affine): {max_diff}"

    # --- Also exercise the general affine path (non-trivial gamma/beta). ---
    gamma = 1.0 + 0.1 * jax.random.normal(k_g, (D_OUT,), dtype=jnp.float32)
    beta = 0.1 * jax.random.normal(k_b2, (D_OUT,), dtype=jnp.float32)
    prepared_aff = prepare_quant_ada_layer_norm(wq, w_scale_vec, bias, gamma, beta, eps=EPS)
    q_aff, scale_aff = quant_ada_layer_norm(x, prepared_aff)
    jax.block_until_ready((q_aff, scale_aff))
    q_ref2, scale_ref2 = _reference(x, wq, w_scale_vec, bias, gamma, beta, EPS)
    np.testing.assert_allclose(np.asarray(scale_aff), np.asarray(scale_ref2),
                               rtol=1e-3, atol=1e-6)
    max_diff2 = int(np.max(np.abs(np.asarray(q_aff, np.int32) - np.asarray(q_ref2, np.int32))))
    assert max_diff2 <= 1, f"int8 mismatch (affine): {max_diff2}"

    print("KERNEL_OK")
</pallas_src>

<mosaic_0001>
module attributes {stable_mosaic.version = 11 : i64} {
  func.func @_quant_ada_ln_kernel(%arg0: i32, %arg1: memref<256x128xbf16, #tpu.memory_space<vmem>>, %arg2: memref<128x256xbf16, #tpu.memory_space<vmem>>, %arg3: memref<2x256xf32, #tpu.memory_space<vmem>>, %arg4: memref<256x256xi8, #tpu.memory_space<vmem>>, %arg5: memref<256x1xf32, #tpu.memory_space<vmem>>) attributes {dimension_semantics = [#tpu.dimension_semantics<parallel>], iteration_bounds = array<i64: 1>, scalar_prefetch = 0 : i64, scratch_operands = 0 : i64, tpu.core_type = #tpu.core_type<tc>, window_params = [{transform_indices = @transform_0, window_bounds = array<i64: 256, 128>}, {pipeline_mode = #tpu.pipeline_mode<synchronous>, transform_indices = @transform_1, window_bounds = array<i64: 128, 256>}, {pipeline_mode = #tpu.pipeline_mode<synchronous>, transform_indices = @transform_2, window_bounds = array<i64: 2, 256>}, {transform_indices = @transform_3, window_bounds = array<i64: 256, 256>}, {transform_indices = @transform_4, window_bounds = array<i64: 256, 1>}]} {
    %c0 = arith.constant 0 : index
    %c0_0 = arith.constant 0 : index
    %0 = vector.load %arg1[%c0, %c0_0] : memref<256x128xbf16, #tpu.memory_space<vmem>>, vector<256x128xbf16>
    %1 = arith.extf %0 : vector<256x128xbf16> to vector<256x128xf32>
    %2 = arith.negf %1 : vector<256x128xf32>
    %3 = math.exp %2 : vector<256x128xf32>
    %cst = arith.constant 1.000000e+00 : f32
    %4 = vector.broadcast %cst : f32 to vector<256x128xf32>
    %5 = arith.addf %4, %3 : vector<256x128xf32>
    %6 = arith.divf %4, %5 : vector<256x128xf32>
    %7 = arith.mulf %1, %6 : vector<256x128xf32>
    %8 = math.absf %7 : vector<256x128xf32>
    %cst_1 = arith.constant dense<0xFF800000> : vector<256xf32>
    %9 = vector.multi_reduction <maximumf>, %8, %cst_1 [1] : vector<256x128xf32> to vector<256xf32>
    %10 = vector.shape_cast %9 : vector<256xf32> to vector<256x1xf32>
    %cst_2 = arith.constant 9.99999993E-9 : f32
    %11 = vector.broadcast %cst_2 : f32 to vector<256x1xf32>
    %12 = arith.maximumf %10, %11 : vector<256x1xf32>
    %cst_3 = arith.constant 1.270000e+02 : f32
    %13 = vector.broadcast %cst_3 : f32 to vector<256x1xf32>
    %14 = arith.divf %13, %12 : vector<256x1xf32>
    %15 = vector.broadcast %14 : vector<256x1xf32> to vector<256x128xf32>
    %16 = arith.mulf %7, %15 : vector<256x128xf32>
    %17 = math.roundeven %16 : vector<256x128xf32>
    %cst_4 = arith.constant -1.270000e+02 : f32
    %cst_5 = arith.constant 1.270000e+02 : f32
    %18 = vector.broadcast %cst_4 : f32 to vector<256x128xf32>
    %19 = arith.maximumf %18, %17 : vector<256x128xf32>
    %20 = vector.broadcast %cst_5 : f32 to vector<256x128xf32>
    %21 = arith.minimumf %20, %19 : vector<256x128xf32>
    %22 = arith.truncf %21 : vector<256x128xf32> to vector<256x128xbf16>
    %c0_6 = arith.constant 0 : index
    %c0_7 = arith.constant 0 : index
    %23 = vector.load %arg2[%c0_6, %c0_7] : memref<128x256xbf16, #tpu.memory_space<vmem>>, vector<128x256xbf16>
    %cst_8 = arith.constant dense<0.000000e+00> : vector<256x256xf32>
    %24 = tpu.matmul %22, %23, %cst_8 {dimension_numbers = #tpu.dot_dimension_numbers<[1], [0], [0], [1], [0, 0, 1, 1], [], []>} : vector<256x128xbf16>, vector<128x256xbf16>, vector<256x256xf32> -> vector<256x256xf32>
    %c0_9 = arith.constant 0 : index
    %c0_10 = arith.constant 0 : index
    %25 = vector.load %arg3[%c0_9, %c0_10] : memref<2x256xf32, #tpu.memory_space<vmem>>, vector<1x256xf32>
    %c1 = arith.constant 1 : index
    %c0_11 = arith.constant 0 : index
    %26 = vector.load %arg3[%c1, %c0_11] : memref<2x256xf32, #tpu.memory_space<vmem>>, vector<1x256xf32>
    %27 = vector.broadcast %12 : vector<256x1xf32> to vector<256x256xf32>
    %28 = arith.mulf %24, %27 : vector<256x256xf32>
    %29 = vector.broadcast %25 : vector<1x256xf32> to vector<256x256xf32>
    %30 = arith.mulf %28, %29 : vector<256x256xf32>
    %31 = vector.broadcast %26 : vector<1x256xf32> to vector<256x256xf32>
    %32 = arith.addf %30, %31 : vector<256x256xf32>
    %cst_12 = arith.constant 1.000000e+00 : f32
    %33 = vector.broadcast %cst_12 : f32 to vector<256x1xf32>
    %cst_13 = arith.constant dense<0.000000e+00> : vector<256x1xf32>
    %34 = tpu.matmul %32, %33, %cst_13 {dimension_numbers = #tpu.dot_dimension_numbers<[1], [0], [0], [1], [0, 0, 1, 1], [], []>} : vector<256x256xf32>, vector<256x1xf32>, vector<256x1xf32> -> vector<256x1xf32>
    %cst_14 = arith.constant 3.906250e-03 : f32
    %35 = vector.broadcast %cst_14 : f32 to vector<256x1xf32>
    %36 = arith.mulf %34, %35 : vector<256x1xf32>
    %37 = vector.broadcast %36 : vector<256x1xf32> to vector<256x256xf32>
    %38 = arith.subf %32, %37 : vector<256x256xf32>
    %39 = arith.mulf %38, %38 : vector<256x256xf32>
    %cst_15 = arith.constant dense<0.000000e+00> : vector<256x1xf32>
    %40 = tpu.matmul %39, %33, %cst_15 {dimension_numbers = #tpu.dot_dimension_numbers<[1], [0], [0], [1], [0, 0, 1, 1], [], []>} : vector<256x256xf32>, vector<256x1xf32>, vector<256x1xf32> -> vector<256x1xf32>
    %cst_16 = arith.constant 3.906250e-03 : f32
    %41 = vector.broadcast %cst_16 : f32 to vector<256x1xf32>
    %42 = arith.mulf %40, %41 : vector<256x1xf32>
    %cst_17 = arith.constant 9.99999974E-6 : f32
    %43 = vector.broadcast %cst_17 : f32 to vector<256x1xf32>
    %44 = arith.addf %42, %43 : vector<256x1xf32>
    %45 = math.rsqrt %44 : vector<256x1xf32>
    %46 = vector.broadcast %45 : vector<256x1xf32> to vector<256x256xf32>
    %47 = arith.mulf %38, %46 : vector<256x256xf32>
    %48 = math.absf %47 : vector<256x256xf32>
    %cst_18 = arith.constant dense<0xFF800000> : vector<256xf32>
    %49 = vector.multi_reduction <maximumf>, %48, %cst_18 [1] : vector<256x256xf32> to vector<256xf32>
    %50 = vector.shape_cast %49 : vector<256xf32> to vector<256x1xf32>
    %cst_19 = arith.constant 9.99999993E-9 : f32
    %51 = vector.broadcast %cst_19 : f32 to vector<256x1xf32>
    %52 = arith.maximumf %50, %51 : vector<256x1xf32>
    %cst_20 = arith.constant 1.270000e+02 : f32
    %53 = vector.broadcast %cst_20 : f32 to vector<256x1xf32>
    %54 = arith.divf %53, %52 : vector<256x1xf32>
    %55 = vector.broadcast %54 : vector<256x1xf32> to vector<256x256xf32>
    %56 = arith.mulf %47, %55 : vector<256x256xf32>
    %57 = math.roundeven %56 : vector<256x256xf32>
    %cst_21 = arith.constant -1.270000e+02 : f32
    %cst_22 = arith.constant 1.270000e+02 : f32
    %58 = vector.broadcast %cst_21 : f32 to vector<256x256xf32>
    %59 = arith.maximumf %58, %57 : vector<256x256xf32>
    %60 = vector.broadcast %cst_22 : f32 to vector<256x256xf32>
    %61 = arith.minimumf %60, %59 : vector<256x256xf32>
    %62 = arith.fptosi %61 : vector<256x256xf32> to vector<256x256xi8>
    %c0_23 = arith.constant 0 : index
    %c0_24 = arith.constant 0 : index
    %63 = vector.load %arg4[%c0_23, %c0_24] : memref<256x256xi8, #tpu.memory_space<vmem>>, vector<256x256xi8>
    tpu.vector_store %arg4[%c0_23, %c0_24], %62 {strides = array<i32>} : memref<256x256xi8, #tpu.memory_space<vmem>>, vector<256x256xi8>,
    %cst_25 = arith.constant 0.00787401571 : f32
    %64 = vector.broadcast %cst_25 : f32 to vector<256x1xf32>
    %65 = arith.mulf %52, %64 : vector<256x1xf32>
    %c0_26 = arith.constant 0 : index
    %c0_27 = arith.constant 0 : index
    %66 = vector.load %arg5[%c0_26, %c0_27] : memref<256x1xf32, #tpu.memory_space<vmem>>, vector<256x1xf32>
    tpu.vector_store %arg5[%c0_26, %c0_27], %65 {strides = array<i32>} : memref<256x1xf32, #tpu.memory_space<vmem>>, vector<256x1xf32>,
    return
  }
  func.func @transform_0(%arg0: i32) -> (i32, i32) {
    %c0_i32 = arith.constant 0 : i32
    %c0_i32_0 = arith.constant 0 : i32
    return %arg0, %c0_i32 : i32, i32
  }
  func.func @transform_1(%arg0: i32) -> (i32, i32) {
    %c0_i32 = arith.constant 0 : i32
    %c0_i32_0 = arith.constant 0 : i32
    %c0_i32_1 = arith.constant 0 : i32
    return %c0_i32, %c0_i32_0 : i32, i32
  }
  func.func @transform_2(%arg0: i32) -> (i32, i32) {
    %c0_i32 = arith.constant 0 : i32
    %c0_i32_0 = arith.constant 0 : i32
    %c0_i32_1 = arith.constant 0 : i32
    return %c0_i32, %c0_i32_0 : i32, i32
  }
  func.func @transform_3(%arg0: i32) -> (i32, i32) {
    %c0_i32 = arith.constant 0 : i32
    %c0_i32_0 = arith.constant 0 : i32
    return %arg0, %c0_i32 : i32, i32
  }
  func.func @transform_4(%arg0: i32) -> (i32, i32) {
    %c0_i32 = arith.constant 0 : i32
    %c0_i32_0 = arith.constant 0 : i32
    return %arg0, %c0_i32 : i32, i32
  }
}

</mosaic_0001>

<llo_original>
// kernel: tpu_custom_call.1
$region0: #{tpu_custom_call.1}
  #allocation0 [shape = 'u32[]', space=smem, size = 0x4, offset = 0x4, fixed_abs, tag = 'smem constant byte address 0x4 - core index']
  #allocation1 [shape = 'u32[144,128]{1,0:T(1,128)}', space=vmem, size = 0x12000, scoped, tag = 'internal scratch']
  %s0 = inlined_call_operand.hbm [shape: bf16[256,128], index: 0, kind: input, shape index: {}]
  %s1 = inlined_call_operand.hbm [shape: bf16[128,256], index: 1, kind: input, shape index: {}]
  %s2 = inlined_call_operand.vmem [shape: f32[2,256], index: 2, kind: input, shape index: {}]
  %s3 = inlined_call_operand.hbm [shape: s8[256,256], index: 3, kind: output, shape index: {0}]
  %s4 = inlined_call_operand.vmem [shape: f32[256,1], index: 4, kind: output, shape index: {1}]
  %5 = xla_tuple %s3, %s4
  %s6 = sld [smem:[#allocation0]]
  $region38: #{tpu_custom_call.1} parent=0
    _
  %s8 = ssub.s32 1, %s6
  %s9 = scalar_select 0, %s8, %s6
  $region1: #{tpu_custom_call.1} parent=0
    #allocation2 [shape = 'u8[65536]{0}', space=vmem, size = 0x10000, scoped, tag = 'input window, operand 0, single buffered']
    #allocation3 [shape = 's32[1]{0}', space=sflag, size = 0x4, scoped, tag = 'scoped memory for tpu_custom_call.1']
    #allocation4 [shape = 's32[1]{0}', space=sflag, size = 0x4, scoped, tag = 'scoped memory for tpu_custom_call.1']
    #allocation5 [shape = 'u8[65536]{0}', space=vmem, size = 0x10000, scoped, tag = 'input window, operand 1, single buffered']
    #allocation6 [shape = 's32[1]{0}', space=sflag, size = 0x4, scoped, tag = 'scoped memory for tpu_custom_call.1']
    #allocation7 [shape = 'u8[65536]{0}', space=vmem, size = 0x10000, scoped, tag = 'output window, operand 0, single buffered']
    %10 = vsyncpa [#allocation3], 0
    %11 = vsyncpa [#allocation6], 0
    %12 = vsyncpa [#allocation4], 0
    // Predicated region
    $region2: #{tpu_custom_call.1} parent=1 // pred_check
      _
    $region3: #{tpu_custom_call.1} parent=1 // pred_check_branch
      %14 = sbr.rel (0) target = $region5
    $region4: #{tpu_custom_call.1} parent=1 // pred_region
      %s16 = ssub.s32 2048, 2048
      %17 = vsyncadd [#allocation3], %s16
      %s18 = sshll.u32 [#allocation2], 4
      %s19 = int_to_ptr.vmem [resolvable:$true] %s18
      %24 = dma.hbm_to_vmem [thread:$0]  %s0, 2048, %s19, [#allocation3], 64, 64, 4
    $region5: #{tpu_custom_call.1} parent=1 // pred_fallthru
      _
    // Predicated region
    $region6: #{tpu_custom_call.1} parent=1 // pred_check
      _
    $region7: #{tpu_custom_call.1} parent=1 // pred_check_branch
      %26 = sbr.rel (0) target = $region9
    $region8: #{tpu_custom_call.1} parent=1 // pred_region
      %s28 = ssub.s32 2048, 2048
      %29 = vsyncadd [#allocation6], %s28
      %s30 = sshll.u32 [#allocation5], 4
      %s31 = int_to_ptr.vmem [resolvable:$true] %s30
      %36 = dma.hbm_to_vmem [thread:$0]  %s1, 2048, %s31, [#allocation6], 128, 128, 8
    $region9: #{tpu_custom_call.1} parent=1 // pred_fallthru
      _
    // Predicated region
    $region10: #{tpu_custom_call.1} parent=1 // pred_check
      _
    $region11: #{tpu_custom_call.1} parent=1 // pred_check_branch
      %38 = sbr.rel (0) target = $region13
    $region12: #{tpu_custom_call.1} parent=1 // pred_region
      _
    $region13: #{tpu_custom_call.1} parent=1 // pred_fallthru
      _
    // Predicated region
    $region14: #{tpu_custom_call.1} parent=1 // pred_check
      _
    $region15: #{tpu_custom_call.1} parent=1 // pred_check_branch
      %40 = sbr.rel (0) target = $region17
    $region16: #{tpu_custom_call.1} parent=1 // pred_region
      %41 = dma.done [#allocation3], 2048
    $region17: #{tpu_custom_call.1} parent=1 // pred_fallthru
      _
    // Predicated region
    $region18: #{tpu_custom_call.1} parent=1 // pred_check
      _
    $region19: #{tpu_custom_call.1} parent=1 // pred_check_branch
      %43 = sbr.rel (0) target = $region21
    $region20: #{tpu_custom_call.1} parent=1 // pred_region
      %44 = dma.done [#allocation6], 2048
    $region21: #{tpu_custom_call.1} parent=1 // pred_fallthru
      _
    %v46 = vld [vmem:[#allocation2] sm:$0xf]
    %v47 = vld [vmem:[#allocation2 + $0x4] sm:$0xf]
    %v48 = vld [vmem:[#allocation2 + $0x8] sm:$0xf]
    %v49 = vld [vmem:[#allocation2 + $0xc] sm:$0xf]
    %v50 = vld [vmem:[#allocation2 + $0x10] sm:$0xf]
    %v51 = vld [vmem:[#allocation2 + $0x14] sm:$0xf]
    %v52 = vld [vmem:[#allocation2 + $0x18] sm:$0xf]
    %v53 = vld [vmem:[#allocation2 + $0x1c] sm:$0xf]
    %v54 = vld [vmem:[#allocation2 + $0x20] sm:$0xf]
    %v55 = vld [vmem:[#allocation2 + $0x24] sm:$0xf]
    %v56 = vld [vmem:[#allocation2 + $0x28] sm:$0xf]
    %v57 = vld [vmem:[#allocation2 + $0x2c] sm:$0xf]
    %v58 = vld [vmem:[#allocation2 + $0x30] sm:$0xf]
    %v59 = vld [vmem:[#allocation2 + $0x34] sm:$0xf]
    %v60 = vld [vmem:[#allocation2 + $0x38] sm:$0xf]
    %v61 = vld [vmem:[#allocation2 + $0x3c] sm:$0xf]
    %v62 = vld [vmem:[#allocation2 + $0x40] sm:$0xf]
    %v63 = vld [vmem:[#allocation2 + $0x44] sm:$0xf]
    %v64 = vld [vmem:[#allocation2 + $0x48] sm:$0xf]
    %v65 = vld [vmem:[#allocation2 + $0x4c] sm:$0xf]
    %v66 = vld [vmem:[#allocation2 + $0x50] sm:$0xf]
    %v67 = vld [vmem:[#allocation2 + $0x54] sm:$0xf]
    %v68 = vld [vmem:[#allocation2 + $0x58] sm:$0xf]
    %v69 = vld [vmem:[#allocation2 + $0x5c] sm:$0xf]
    %v70 = vld [vmem:[#allocation2 + $0x60] sm:$0xf]
    %v71 = vld [vmem:[#allocation2 + $0x64] sm:$0xf]
    %v72 = vld [vmem:[#allocation2 + $0x68] sm:$0xf]
    %v73 = vld [vmem:[#allocation2 + $0x6c] sm:$0xf]
    %v74 = vld [vmem:[#allocation2 + $0x70] sm:$0xf]
    %v75 = vld [vmem:[#allocation2 + $0x74] sm:$0xf]
    %v76 = vld [vmem:[#allocation2 + $0x78] sm:$0xf]
    %v77 = vld [vmem:[#allocation2 + $0x7c] sm:$0xf]
    %v78 = vunpack.c.l.bf16 %v46
    %v79 = vunpack.c.l.bf16 %v47
    %v80 = vunpack.c.l.bf16 %v48
    %v81 = vunpack.c.l.bf16 %v49
    %v82 = vunpack.c.l.bf16 %v50
    %v83 = vunpack.c.l.bf16 %v51
    %v84 = vunpack.c.l.bf16 %v52
    %v85 = vunpack.c.l.bf16 %v53
    %v86 = vunpack.c.l.bf16 %v54
    %v87 = vunpack.c.l.bf16 %v55
    %v88 = vunpack.c.l.bf16 %v56
    %v89 = vunpack.c.l.bf16 %v57
    %v90 = vunpack.c.l.bf16 %v58
    %v91 = vunpack.c.l.bf16 %v59
    %v92 = vunpack.c.l.bf16 %v60
    %v93 = vunpack.c.l.bf16 %v61
    %v94 = vunpack.c.l.bf16 %v62
    %v95 = vunpack.c.l.bf16 %v63
    %v96 = vunpack.c.l.bf16 %v64
    %v97 = vunpack.c.l.bf16 %v65
    %v98 = vunpack.c.l.bf16 %v66
    %v99 = vunpack.c.l.bf16 %v67
    %v100 = vunpack.c.l.bf16 %v68
    %v101 = vunpack.c.l.bf16 %v69
    %v102 = vunpack.c.l.bf16 %v70
    %v103 = vunpack.c.l.bf16 %v71
    %v104 = vunpack.c.l.bf16 %v72
    %v105 = vunpack.c.l.bf16 %v73
    %v106 = vunpack.c.l.bf16 %v74
    %v107 = vunpack.c.l.bf16 %v75
    %v108 = vunpack.c.l.bf16 %v76
    %v109 = vunpack.c.l.bf16 %v77
    %v110 = vxor.u32 %v78, 2147483648
    %v111 = vxor.u32 %v79, 2147483648
    %v112 = vxor.u32 %v80, 2147483648
    %v113 = vxor.u32 %v81, 2147483648
    %v114 = vxor.u32 %v82, 2147483648
    %v115 = vxor.u32 %v83, 2147483648
    %v116 = vxor.u32 %v84, 2147483648
    %v117 = vxor.u32 %v85, 2147483648
    %v118 = vxor.u32 %v86, 2147483648
    %v119 = vxor.u32 %v87, 2147483648
    %v120 = vxor.u32 %v88, 2147483648
    %v121 = vxor.u32 %v89, 2147483648
    %v122 = vxor.u32 %v90, 2147483648
    %v123 = vxor.u32 %v91, 2147483648
    %v124 = vxor.u32 %v92, 2147483648
    %v125 = vxor.u32 %v93, 2147483648
    %v126 = vxor.u32 %v94, 2147483648
    %v127 = vxor.u32 %v95, 2147483648
    %v128 = vxor.u32 %v96, 2147483648
    %v129 = vxor.u32 %v97, 2147483648
    %v130 = vxor.u32 %v98, 2147483648
    %v131 = vxor.u32 %v99, 2147483648
    %v132 = vxor.u32 %v100, 2147483648
    %v133 = vxor.u32 %v101, 2147483648
    %v134 = vxor.u32 %v102, 2147483648
    %v135 = vxor.u32 %v103, 2147483648
    %v136 = vxor.u32 %v104, 2147483648
    %v137 = vxor.u32 %v105, 2147483648
    %v138 = vxor.u32 %v106, 2147483648
    %v139 = vxor.u32 %v107, 2147483648
    %v140 = vxor.u32 %v108, 2147483648
    %v141 = vxor.u32 %v109, 2147483648
    %v142 = vmul.f32 %v110, 1.442695
    %v143 = vpow.pop %v142
    %v144 = vmul.f32 %v111, 1.442695
    %v145 = vpow.pop %v144
    %v146 = vmul.f32 %v112, 1.442695
    %v147 = vpow.pop %v146
    %v148 = vmul.f32 %v113, 1.442695
    %v149 = vpow.pop %v148
    %v150 = vmul.f32 %v114, 1.442695
    %v151 = vpow.pop %v150
    %v152 = vmul.f32 %v115, 1.442695
    %v153 = vpow.pop %v152
    %v154 = vmul.f32 %v116, 1.442695
    %v155 = vpow.pop %v154
    %v156 = vmul.f32 %v117, 1.442695
    %v157 = vpow.pop %v156
    %v158 = vmul.f32 %v118, 1.442695
    %v159 = vpow.pop %v158
    %v160 = vmul.f32 %v119, 1.442695
    %v161 = vpow.pop %v160
    %v162 = vmul.f32 %v120, 1.442695
    %v163 = vpow.pop %v162
    %v164 = vmul.f32 %v121, 1.442695
    %v165 = vpow.pop %v164
    %v166 = vmul.f32 %v122, 1.442695
    %v167 = vpow.pop %v166
    %v168 = vmul.f32 %v123, 1.442695
    %v169 = vpow.pop %v168
    %v170 = vmul.f32 %v124, 1.442695
    %v171 = vpow.pop %v170
    %v172 = vmul.f32 %v125, 1.442695
    %v173 = vpow.pop %v172
    %v174 = vmul.f32 %v126, 1.442695
    %v175 = vpow.pop %v174
    %v176 = vmul.f32 %v127, 1.442695
    %v177 = vpow.pop %v176
    %v178 = vmul.f32 %v128, 1.442695
    %v179 = vpow.pop %v178
    %v180 = vmul.f32 %v129, 1.442695
    %v181 = vpow.pop %v180
    %v182 = vmul.f32 %v130, 1.442695
    %v183 = vpow.pop %v182
    %v184 = vmul.f32 %v131, 1.442695
    %v185 = vpow.pop %v184
    %v186 = vmul.f32 %v132, 1.442695
    %v187 = vpow.pop %v186
    %v188 = vmul.f32 %v133, 1.442695
    %v189 = vpow.pop %v188
    %v190 = vmul.f32 %v134, 1.442695
    %v191 = vpow.pop %v190
    %v192 = vmul.f32 %v135, 1.442695
    %v193 = vpow.pop %v192
    %v194 = vmul.f32 %v136, 1.442695
    %v195 = vpow.pop %v194
    %v196 = vmul.f32 %v137, 1.442695
    %v197 = vpow.pop %v196
    %v198 = vmul.f32 %v138, 1.442695
    %v199 = vpow.pop %v198
    %v200 = vmul.f32 %v139, 1.442695
    %v201 = vpow.pop %v200
    %v202 = vmul.f32 %v140, 1.442695
    %v203 = vpow.pop %v202
    %v204 = vmul.f32 %v141, 1.442695
    %v205 = vpow.pop %v204
    %v206 = vadd.f32 %v143, 1.0
    %v207 = vadd.f32 %v145, 1.0
    %v208 = vadd.f32 %v147, 1.0
    %v209 = vadd.f32 %v149, 1.0
    %v210 = vadd.f32 %v151, 1.0
    %v211 = vadd.f32 %v153, 1.0
    %v212 = vadd.f32 %v155, 1.0
    %v213 = vadd.f32 %v157, 1.0
    %v214 = vadd.f32 %v159, 1.0
    %v215 = vadd.f32 %v161, 1.0
    %v216 = vadd.f32 %v163, 1.0
    %v217 = vadd.f32 %v165, 1.0
    %v218 = vadd.f32 %v167, 1.0
    %v219 = vadd.f32 %v169, 1.0
    %v220 = vadd.f32 %v171, 1.0
    %v221 = vadd.f32 %v173, 1.0
    %v222 = vadd.f32 %v175, 1.0
    %v223 = vadd.f32 %v177, 1.0
    %v224 = vadd.f32 %v179, 1.0
    %v225 = vadd.f32 %v181, 1.0
    %v226 = vadd.f32 %v183, 1.0
    %v227 = vadd.f32 %v185, 1.0
    %v228 = vadd.f32 %v187, 1.0
    %v229 = vadd.f32 %v189, 1.0
    %v230 = vadd.f32 %v191, 1.0
    %v231 = vadd.f32 %v193, 1.0
    %v232 = vadd.f32 %v195, 1.0
    %v233 = vadd.f32 %v197, 1.0
    %v234 = vadd.f32 %v199, 1.0
    %v235 = vadd.f32 %v201, 1.0
    %v236 = vadd.f32 %v203, 1.0
    %v237 = vadd.f32 %v205, 1.0
    %v238 = vrcp.pop %v206
    %v239 = vmul.f32 1.0, %v238
    %v240 = vrcp.pop %v207
    %v241 = vmul.f32 1.0, %v240
    %v242 = vrcp.pop %v208
    %v243 = vmul.f32 1.0, %v242
    %v244 = vrcp.pop %v209
    %v245 = vmul.f32 1.0, %v244
    %v246 = vrcp.pop %v210
    %v247 = vmul.f32 1.0, %v246
    %v248 = vrcp.pop %v211
    %v249 = vmul.f32 1.0, %v248
    %v250 = vrcp.pop %v212
    %v251 = vmul.f32 1.0, %v250
    %v252 = vrcp.pop %v213
    %v253 = vmul.f32 1.0, %v252
    %v254 = vrcp.pop %v214
    %v255 = vmul.f32 1.0, %v254
    %v256 = vrcp.pop %v215
    %v257 = vmul.f32 1.0, %v256
    %v258 = vrcp.pop %v216
    %v259 = vmul.f32 1.0, %v258
    %v260 = vrcp.pop %v217
    %v261 = vmul.f32 1.0, %v260
    %v262 = vrcp.pop %v218
    %v263 = vmul.f32 1.0, %v262
    %v264 = vrcp.pop %v219
    %v265 = vmul.f32 1.0, %v264
    %v266 = vrcp.pop %v220
    %v267 = vmul.f32 1.0, %v266
    %v268 = vrcp.pop %v221
    %v269 = vmul.f32 1.0, %v268
    %v270 = vrcp.pop %v222
    %v271 = vmul.f32 1.0, %v270
    %v272 = vrcp.pop %v223
    %v273 = vmul.f32 1.0, %v272
    %v274 = vrcp.pop %v224
    %v275 = vmul.f32 1.0, %v274
    %v276 = vrcp.pop %v225
    %v277 = vmul.f32 1.0, %v276
    %v278 = vrcp.pop %v226
    %v279 = vmul.f32 1.0, %v278
    %v280 = vrcp.pop %v227
    %v281 = vmul.f32 1.0, %v280
    %v282 = vrcp.pop %v228
    %v283 = vmul.f32 1.0, %v282
    %v284 = vrcp.pop %v229
    %v285 = vmul.f32 1.0, %v284
    %v286 = vrcp.pop %v230
    %v287 = vmul.f32 1.0, %v286
    %v288 = vrcp.pop %v231
    %v289 = vmul.f32 1.0, %v288
    %v290 = vrcp.pop %v232
    %v291 = vmul.f32 1.0, %v290
    %v292 = vrcp.pop %v233
    %v293 = vmul.f32 1.0, %v292
    %v294 = vrcp.pop %v234
    %v295 = vmul.f32 1.0, %v294
    %v296 = vrcp.pop %v235
    %v297 = vmul.f32 1.0, %v296
    %v298 = vrcp.pop %v236
    %v299 = vmul.f32 1.0, %v298
    %v300 = vrcp.pop %v237
    %v301 = vmul.f32 1.0, %v300
    %v302 = vmul.f32 %v78, %v239
    %v303 = vmul.f32 %v79, %v241
    %v304 = vmul.f32 %v80, %v243
    %v305 = vmul.f32 %v81, %v245
    %v306 = vmul.f32 %v82, %v247
    %v307 = vmul.f32 %v83, %v249
    %v308 = vmul.f32 %v84, %v251
    %v309 = vmul.f32 %v85, %v253
    %v310 = vmul.f32 %v86, %v255
    %v311 = vmul.f32 %v87, %v257
    %v312 = vmul.f32 %v88, %v259
    %v313 = vmul.f32 %v89, %v261
    %v314 = vmul.f32 %v90, %v263
    %v315 = vmul.f32 %v91, %v265
    %v316 = vmul.f32 %v92, %v267
    %v317 = vmul.f32 %v93, %v269
    %v318 = vmul.f32 %v94, %v271
    %v319 = vmul.f32 %v95, %v273
    %v320 = vmul.f32 %v96, %v275
    %v321 = vmul.f32 %v97, %v277
    %v322 = vmul.f32 %v98, %v279
    %v323 = vmul.f32 %v99, %v281
    %v324 = vmul.f32 %v100, %v283
    %v325 = vmul.f32 %v101, %v285
    %v326 = vmul.f32 %v102, %v287
    %v327 = vmul.f32 %v103, %v289
    %v328 = vmul.f32 %v104, %v291
    %v329 = vmul.f32 %v105, %v293
    %v330 = vmul.f32 %v106, %v295
    %v331 = vmul.f32 %v107, %v297
    %v332 = vmul.f32 %v108, %v299
    %v333 = vmul.f32 %v109, %v301
    %v334 = vand.u32 2147483647, %v302
    %v335 = vand.u32 2147483647, %v303
    %v336 = vand.u32 2147483647, %v304
    %v337 = vand.u32 2147483647, %v305
    %v338 = vand.u32 2147483647, %v306
    %v339 = vand.u32 2147483647, %v307
    %v340 = vand.u32 2147483647, %v308
    %v341 = vand.u32 2147483647, %v309
    %v342 = vand.u32 2147483647, %v310
    %v343 = vand.u32 2147483647, %v311
    %v344 = vand.u32 2147483647, %v312
    %v345 = vand.u32 2147483647, %v313
    %v346 = vand.u32 2147483647, %v314
    %v347 = vand.u32 2147483647, %v315
    %v348 = vand.u32 2147483647, %v316
    %v349 = vand.u32 2147483647, %v317
    %v350 = vand.u32 2147483647, %v318
    %v351 = vand.u32 2147483647, %v319
    %v352 = vand.u32 2147483647, %v320
    %v353 = vand.u32 2147483647, %v321
    %v354 = vand.u32 2147483647, %v322
    %v355 = vand.u32 2147483647, %v323
    %v356 = vand.u32 2147483647, %v324
    %v357 = vand.u32 2147483647, %v325
    %v358 = vand.u32 2147483647, %v326
    %v359 = vand.u32 2147483647, %v327
    %v360 = vand.u32 2147483647, %v328
    %v361 = vand.u32 2147483647, %v329
    %v362 = vand.u32 2147483647, %v330
    %v363 = vand.u32 2147483647, %v331
    %v364 = vand.u32 2147483647, %v332
    %v365 = vand.u32 2147483647, %v333
    %366 = vmax.xlane.f32.xlu0 %v334
    %v367 = vpop.xlane.xlu0 %366
    %368 = vmax.xlane.f32.xlu0 %v335
    %v369 = vpop.xlane.xlu0 %368
    %370 = vmax.xlane.f32.xlu0 %v336
    %v371 = vpop.xlane.xlu0 %370
    %372 = vmax.xlane.f32.xlu0 %v337
    %v373 = vpop.xlane.xlu0 %372
    %374 = vmax.xlane.f32.xlu0 %v338
    %v375 = vpop.xlane.xlu0 %374
    %376 = vmax.xlane.f32.xlu0 %v339
    %v377 = vpop.xlane.xlu0 %376
    %378 = vmax.xlane.f32.xlu0 %v340
    %v379 = vpop.xlane.xlu0 %378
    %380 = vmax.xlane.f32.xlu0 %v341
    %v381 = vpop.xlane.xlu0 %380
    %382 = vmax.xlane.f32.xlu0 %v342
    %v383 = vpop.xlane.xlu0 %382
    %384 = vmax.xlane.f32.xlu0 %v343
    %v385 = vpop.xlane.xlu0 %384
    %386 = vmax.xlane.f32.xlu0 %v344
    %v387 = vpop.xlane.xlu0 %386
    %388 = vmax.xlane.f32.xlu0 %v345
    %v389 = vpop.xlane.xlu0 %388
    %390 = vmax.xlane.f32.xlu0 %v346
    %v391 = vpop.xlane.xlu0 %390
    %392 = vmax.xlane.f32.xlu0 %v347
    %v393 = vpop.xlane.xlu0 %392
    %394 = vmax.xlane.f32.xlu0 %v348
    %v395 = vpop.xlane.xlu0 %394
    %396 = vmax.xlane.f32.xlu0 %v349
    %v397 = vpop.xlane.xlu0 %396
    %398 = vmax.xlane.f32.xlu0 %v350
    %v399 = vpop.xlane.xlu0 %398
    %400 = vmax.xlane.f32.xlu0 %v351
    %v401 = vpop.xlane.xlu0 %400
    %402 = vmax.xlane.f32.xlu0 %v352
    %v403 = vpop.xlane.xlu0 %402
    %404 = vmax.xlane.f32.xlu0 %v353
    %v405 = vpop.xlane.xlu0 %404
    %406 = vmax.xlane.f32.xlu0 %v354
    %v407 = vpop.xlane.xlu0 %406
    %408 = vmax.xlane.f32.xlu0 %v355
    %v409 = vpop.xlane.xlu0 %408
    %410 = vmax.xlane.f32.xlu0 %v356
    %v411 = vpop.xlane.xlu0 %410
    %412 = vmax.xlane.f32.xlu0 %v357
    %v413 = vpop.xlane.xlu0 %412
    %414 = vmax.xlane.f32.xlu0 %v358
    %v415 = vpop.xlane.xlu0 %414
    %416 = vmax.xlane.f32.xlu0 %v359
    %v417 = vpop.xlane.xlu0 %416
    %418 = vmax.xlane.f32.xlu0 %v360
    %v419 = vpop.xlane.xlu0 %418
    %420 = vmax.xlane.f32.xlu0 %v361
    %v421 = vpop.xlane.xlu0 %420
    %422 = vmax.xlane.f32.xlu0 %v362
    %v423 = vpop.xlane.xlu0 %422
    %424 = vmax.xlane.f32.xlu0 %v363
    %v425 = vpop.xlane.xlu0 %424
    %426 = vmax.xlane.f32.xlu0 %v364
    %v427 = vpop.xlane.xlu0 %426
    %428 = vmax.xlane.f32.xlu0 %v365
    %v429 = vpop.xlane.xlu0 %428
    %v430 = vmax.f32 %v367, 1e-08
    %v431 = vmax.f32 %v369, 1e-08
    %v432 = vmax.f32 %v371, 1e-08
    %v433 = vmax.f32 %v373, 1e-08
    %v434 = vmax.f32 %v375, 1e-08
    %v435 = vmax.f32 %v377, 1e-08
    %v436 = vmax.f32 %v379, 1e-08
    %v437 = vmax.f32 %v381, 1e-08
    %v438 = vmax.f32 %v383, 1e-08
    %v439 = vmax.f32 %v385, 1e-08
    %v440 = vmax.f32 %v387, 1e-08
    %v441 = vmax.f32 %v389, 1e-08
    %v442 = vmax.f32 %v391, 1e-08
    %v443 = vmax.f32 %v393, 1e-08
    %v444 = vmax.f32 %v395, 1e-08
    %v445 = vmax.f32 %v397, 1e-08
    %v446 = vmax.f32 %v399, 1e-08
    %v447 = vmax.f32 %v401, 1e-08
    %v448 = vmax.f32 %v403, 1e-08
    %v449 = vmax.f32 %v405, 1e-08
    %v450 = vmax.f32 %v407, 1e-08
    %v451 = vmax.f32 %v409, 1e-08
    %v452 = vmax.f32 %v411, 1e-08
    %v453 = vmax.f32 %v413, 1e-08
    %v454 = vmax.f32 %v415, 1e-08
    %v455 = vmax.f32 %v417, 1e-08
    %v456 = vmax.f32 %v419, 1e-08
    %v457 = vmax.f32 %v421, 1e-08
    %v458 = vmax.f32 %v423, 1e-08
    %v459 = vmax.f32 %v425, 1e-08
    %v460 = vmax.f32 %v427, 1e-08
    %v461 = vmax.f32 %v429, 1e-08
    %v462 = vrcp.pop %v430
    %v463 = vmul.f32 127.0, %v462
    %v464 = vrcp.pop %v431
    %v465 = vmul.f32 127.0, %v464
    %v466 = vrcp.pop %v432
    %v467 = vmul.f32 127.0, %v466
    %v468 = vrcp.pop %v433
    %v469 = vmul.f32 127.0, %v468
    %v470 = vrcp.pop %v434
    %v471 = vmul.f32 127.0, %v470
    %v472 = vrcp.pop %v435
    %v473 = vmul.f32 127.0, %v472
    %v474 = vrcp.pop %v436
    %v475 = vmul.f32 127.0, %v474
    %v476 = vrcp.pop %v437
    %v477 = vmul.f32 127.0, %v476
    %v478 = vrcp.pop %v438
    %v479 = vmul.f32 127.0, %v478
    %v480 = vrcp.pop %v439
    %v481 = vmul.f32 127.0, %v480
    %v482 = vrcp.pop %v440
    %v483 = vmul.f32 127.0, %v482
    %v484 = vrcp.pop %v441
    %v485 = vmul.f32 127.0, %v484
    %v486 = vrcp.pop %v442
    %v487 = vmul.f32 127.0, %v486
    %v488 = vrcp.pop %v443
    %v489 = vmul.f32 127.0, %v488
    %v490 = vrcp.pop %v444
    %v491 = vmul.f32 127.0, %v490
    %v492 = vrcp.pop %v445
    %v493 = vmul.f32 127.0, %v492
    %v494 = vrcp.pop %v446
    %v495 = vmul.f32 127.0, %v494
    %v496 = vrcp.pop %v447
    %v497 = vmul.f32 127.0, %v496
    %v498 = vrcp.pop %v448
    %v499 = vmul.f32 127.0, %v498
    %v500 = vrcp.pop %v449
    %v501 = vmul.f32 127.0, %v500
    %v502 = vrcp.pop %v450
    %v503 = vmul.f32 127.0, %v502
    %v504 = vrcp.pop %v451
    %v505 = vmul.f32 127.0, %v504
    %v506 = vrcp.pop %v452
    %v507 = vmul.f32 127.0, %v506
    %v508 = vrcp.pop %v453
    %v509 = vmul.f32 127.0, %v508
    %v510 = vrcp.pop %v454
    %v511 = vmul.f32 127.0, %v510
    %v512 = vrcp.pop %v455
    %v513 = vmul.f32 127.0, %v512
    %v514 = vrcp.pop %v456
    %v515 = vmul.f32 127.0, %v514
    %v516 = vrcp.pop %v457
    %v517 = vmul.f32 127.0, %v516
    %v518 = vrcp.pop %v458
    %v519 = vmul.f32 127.0, %v518
    %v520 = vrcp.pop %v459
    %v521 = vmul.f32 127.0, %v520
    %v522 = vrcp.pop %v460
    %v523 = vmul.f32 127.0, %v522
    %v524 = vrcp.pop %v461
    %v525 = vmul.f32 127.0, %v524
    %v526 = vmul.f32 %v302, %v463
    %v527 = vmul.f32 %v303, %v465
    %v528 = vmul.f32 %v304, %v467
    %v529 = vmul.f32 %v305, %v469
    %v530 = vmul.f32 %v306, %v471
    %v531 = vmul.f32 %v307, %v473
    %v532 = vmul.f32 %v308, %v475
    %v533 = vmul.f32 %v309, %v477
    %v534 = vmul.f32 %v310, %v479
    %v535 = vmul.f32 %v311, %v481
    %v536 = vmul.f32 %v312, %v483
    %v537 = vmul.f32 %v313, %v485
    %v538 = vmul.f32 %v314, %v487
    %v539 = vmul.f32 %v315, %v489
    %v540 = vmul.f32 %v316, %v491
    %v541 = vmul.f32 %v317, %v493
    %v542 = vmul.f32 %v318, %v495
    %v543 = vmul.f32 %v319, %v497
    %v544 = vmul.f32 %v320, %v499
    %v545 = vmul.f32 %v321, %v501
    %v546 = vmul.f32 %v322, %v503
    %v547 = vmul.f32 %v323, %v505
    %v548 = vmul.f32 %v324, %v507
    %v549 = vmul.f32 %v325, %v509
    %v550 = vmul.f32 %v326, %v511
    %v551 = vmul.f32 %v327, %v513
    %v552 = vmul.f32 %v328, %v515
    %v553 = vmul.f32 %v329, %v517
    %v554 = vmul.f32 %v330, %v519
    %v555 = vmul.f32 %v331, %v521
    %v556 = vmul.f32 %v332, %v523
    %v557 = vmul.f32 %v333, %v525
    %v558 = vround.ne.pseudo %v526
    %v559 = vround.ne.pseudo %v527
    %v560 = vround.ne.pseudo %v528
    %v561 = vround.ne.pseudo %v529
    %v562 = vround.ne.pseudo %v530
    %v563 = vround.ne.pseudo %v531
    %v564 = vround.ne.pseudo %v532
    %v565 = vround.ne.pseudo %v533
    %v566 = vround.ne.pseudo %v534
    %v567 = vround.ne.pseudo %v535
    %v568 = vround.ne.pseudo %v536
    %v569 = vround.ne.pseudo %v537
    %v570 = vround.ne.pseudo %v538
    %v571 = vround.ne.pseudo %v539
    %v572 = vround.ne.pseudo %v540
    %v573 = vround.ne.pseudo %v541
    %v574 = vround.ne.pseudo %v542
    %v575 = vround.ne.pseudo %v543
    %v576 = vround.ne.pseudo %v544
    %v577 = vround.ne.pseudo %v545
    %v578 = vround.ne.pseudo %v546
    %v579 = vround.ne.pseudo %v547
    %v580 = vround.ne.pseudo %v548
    %v581 = vround.ne.pseudo %v549
    %v582 = vround.ne.pseudo %v550
    %v583 = vround.ne.pseudo %v551
    %v584 = vround.ne.pseudo %v552
    %v585 = vround.ne.pseudo %v553
    %v586 = vround.ne.pseudo %v554
    %v587 = vround.ne.pseudo %v555
    %v588 = vround.ne.pseudo %v556
    %v589 = vround.ne.pseudo %v557
    %v590 = vmax.f32 %v558, -127.0
    %v591 = vmax.f32 %v559, -127.0
    %v592 = vmax.f32 %v560, -127.0
    %v593 = vmax.f32 %v561, -127.0
    %v594 = vmax.f32 %v562, -127.0
    %v595 = vmax.f32 %v563, -127.0
    %v596 = vmax.f32 %v564, -127.0
    %v597 = vmax.f32 %v565, -127.0
    %v598 = vmax.f32 %v566, -127.0
    %v599 = vmax.f32 %v567, -127.0
    %v600 = vmax.f32 %v568, -127.0
    %v601 = vmax.f32 %v569, -127.0
    %v602 = vmax.f32 %v570, -127.0
    %v603 = vmax.f32 %v571, -127.0
    %v604 = vmax.f32 %v572, -127.0
    %v605 = vmax.f32 %v573, -127.0
    %v606 = vmax.f32 %v574, -127.0
    %v607 = vmax.f32 %v575, -127.0
    %v608 = vmax.f32 %v576, -127.0
    %v609 = vmax.f32 %v577, -127.0
    %v610 = vmax.f32 %v578, -127.0
    %v611 = vmax.f32 %v579, -127.0
    %v612 = vmax.f32 %v580, -127.0
    %v613 = vmax.f32 %v581, -127.0
    %v614 = vmax.f32 %v582, -127.0
    %v615 = vmax.f32 %v583, -127.0
    %v616 = vmax.f32 %v584, -127.0
    %v617 = vmax.f32 %v585, -127.0
    %v618 = vmax.f32 %v586, -127.0
    %v619 = vmax.f32 %v587, -127.0
    %v620 = vmax.f32 %v588, -127.0
    %v621 = vmax.f32 %v589, -127.0
    %v622 = vmin.f32 %v590, 127.0
    %v623 = vmin.f32 %v591, 127.0
    %v624 = vmin.f32 %v592, 127.0
    %v625 = vmin.f32 %v593, 127.0
    %v626 = vmin.f32 %v594, 127.0
    %v627 = vmin.f32 %v595, 127.0
    %v628 = vmin.f32 %v596, 127.0
    %v629 = vmin.f32 %v597, 127.0
    %v630 = vmin.f32 %v598, 127.0
    %v631 = vmin.f32 %v599, 127.0
    %v632 = vmin.f32 %v600, 127.0
    %v633 = vmin.f32 %v601, 127.0
    %v634 = vmin.f32 %v602, 127.0
    %v635 = vmin.f32 %v603, 127.0
    %v636 = vmin.f32 %v604, 127.0
    %v637 = vmin.f32 %v605, 127.0
    %v638 = vmin.f32 %v606, 127.0
    %v639 = vmin.f32 %v607, 127.0
    %v640 = vmin.f32 %v608, 127.0
    %v641 = vmin.f32 %v609, 127.0
    %v642 = vmin.f32 %v610, 127.0
    %v643 = vmin.f32 %v611, 127.0
    %v644 = vmin.f32 %v612, 127.0
    %v645 = vmin.f32 %v613, 127.0
    %v646 = vmin.f32 %v614, 127.0
    %v647 = vmin.f32 %v615, 127.0
    %v648 = vmin.f32 %v616, 127.0
    %v649 = vmin.f32 %v617, 127.0
    %v650 = vmin.f32 %v618, 127.0
    %v651 = vmin.f32 %v619, 127.0
    %v652 = vmin.f32 %v620, 127.0
    %v653 = vmin.f32 %v621, 127.0
    %v654 = vpack.c.bf16 %v623, %v622
    %v655 = vpack.c.bf16 %v625, %v624
    %v656 = vpack.c.bf16 %v627, %v626
    %v657 = vpack.c.bf16 %v629, %v628
    %v658 = vpack.c.bf16 %v631, %v630
    %v659 = vpack.c.bf16 %v633, %v632
    %v660 = vpack.c.bf16 %v635, %v634
    %v661 = vpack.c.bf16 %v637, %v636
    %v662 = vpack.c.bf16 %v639, %v638
    %v663 = vpack.c.bf16 %v641, %v640
    %v664 = vpack.c.bf16 %v643, %v642
    %v665 = vpack.c.bf16 %v645, %v644
    %v666 = vpack.c.bf16 %v647, %v646
    %v667 = vpack.c.bf16 %v649, %v648
    %v668 = vpack.c.bf16 %v651, %v650
    %v669 = vpack.c.bf16 %v653, %v652
    %v670 = vld [vmem:[#allocation5] sm:$0xff]
    %v671 = vld [vmem:[#allocation5 + $0x8] sm:$0xff]
    %v672 = vld [vmem:[#allocation5 + $0x10] sm:$0xff]
    %v673 = vld [vmem:[#allocation5 + $0x18] sm:$0xff]
    %v674 = vld [vmem:[#allocation5 + $0x20] sm:$0xff]
    %v675 = vld [vmem:[#allocation5 + $0x28] sm:$0xff]
    %v676 = vld [vmem:[#allocation5 + $0x30] sm:$0xff]
    %v677 = vld [vmem:[#allocation5 + $0x38] sm:$0xff]
    %v678 = vld [vmem:[#allocation5 + $0x40] sm:$0xff]
    %v679 = vld [vmem:[#allocation5 + $0x48] sm:$0xff]
    %v680 = vld [vmem:[#allocation5 + $0x50] sm:$0xff]
    %v681 = vld [vmem:[#allocation5 + $0x58] sm:$0xff]
    %v682 = vld [vmem:[#allocation5 + $0x60] sm:$0xff]
    %v683 = vld [vmem:[#allocation5 + $0x68] sm:$0xff]
    %v684 = vld [vmem:[#allocation5 + $0x70] sm:$0xff]
    %v685 = vld [vmem:[#allocation5 + $0x78] sm:$0xff]
    %v702 = vunpack.c.l.b16 %v670
    %v703 = vunpack.c.h.b16 %v670
    %v704 = vunpack.c.l.b16 %v671
    %v705 = vunpack.c.h.b16 %v671
    %v706 = vunpack.c.l.b16 %v672
    %v707 = vunpack.c.h.b16 %v672
    %v708 = vunpack.c.l.b16 %v673
    %v709 = vunpack.c.h.b16 %v673
    %v710 = vunpack.c.l.b16 %v674
    %v711 = vunpack.c.h.b16 %v674
    %v712 = vunpack.c.l.b16 %v675
    %v713 = vunpack.c.h.b16 %v675
    %v714 = vunpack.c.l.b16 %v676
    %v715 = vunpack.c.h.b16 %v676
    %v716 = vunpack.c.l.b16 %v677
    %v717 = vunpack.c.h.b16 %v677
    %v718 = vunpack.c.l.b16 %v678
    %v719 = vunpack.c.h.b16 %v678
    %v720 = vunpack.c.l.b16 %v679
    %v721 = vunpack.c.h.b16 %v679
    %v722 = vunpack.c.l.b16 %v680
    %v723 = vunpack.c.h.b16 %v680
    %v724 = vunpack.c.l.b16 %v681
    %v725 = vunpack.c.h.b16 %v681
    %v726 = vunpack.c.l.b16 %v682
    %v727 = vunpack.c.h.b16 %v682
    %v728 = vunpack.c.l.b16 %v683
    %v729 = vunpack.c.h.b16 %v683
    %v730 = vunpack.c.l.b16 %v684
    %v731 = vunpack.c.h.b16 %v684
    %v732 = vunpack.c.l.b16 %v685
    %v733 = vunpack.c.h.b16 %v685
    %v734 = vpack.c.b16 %v704, %v702
    %v735 = vpack.c.b16 %v705, %v703
    %v736 = vpack.c.b16 %v708, %v706
    %v737 = vpack.c.b16 %v709, %v707
    %v738 = vpack.c.b16 %v712, %v710
    %v739 = vpack.c.b16 %v713, %v711
    %v740 = vpack.c.b16 %v716, %v714
    %v741 = vpack.c.b16 %v717, %v715
    %v742 = vpack.c.b16 %v720, %v718
    %v743 = vpack.c.b16 %v721, %v719
    %v744 = vpack.c.b16 %v724, %v722
    %v745 = vpack.c.b16 %v725, %v723
    %v746 = vpack.c.b16 %v728, %v726
    %v747 = vpack.c.b16 %v729, %v727
    %v748 = vpack.c.b16 %v732, %v730
    %v749 = vpack.c.b16 %v733, %v731
    %766 = vmatprep.subr.bf16.mxu0 %v735
    %767 = vmatpush1.bf16.msra.mxu0 %v734
    %768 = vmatprep.subr.bf16.mxu0 %v737
    %769 = vmatpush1.bf16.msra.mxu0 %v736
    %770 = vmatprep.subr.bf16.mxu0 %v739
    %771 = vmatpush1.bf16.msra.mxu0 %v738
    %772 = vmatprep.subr.bf16.mxu0 %v741
    %773 = vmatpush1.bf16.msra.mxu0 %v740
    %774 = vmatprep.subr.bf16.mxu0 %v743
    %775 = vmatpush1.bf16.msra.mxu0 %v742
    %776 = vmatprep.subr.bf16.mxu0 %v745
    %777 = vmatpush1.bf16.msra.mxu0 %v744
    %778 = vmatprep.subr.bf16.mxu0 %v747
    %779 = vmatpush1.bf16.msra.mxu0 %v746
    %780 = vmatprep.subr.bf16.mxu0 %v749
    %781 = vmatpush1.bf16.msra.mxu0 %v748
    %782 = vmatprep.subr.bf16.mxu0 0
    %783 = vmatpush1.bf16.msra.mxu0 0
    %784 = vmatprep.subr.bf16.mxu0 0
    %785 = vmatpush1.bf16.msra.mxu0 0
    %786 = vmatprep.subr.bf16.mxu0 0
    %787 = vmatpush1.bf16.msra.mxu0 0
    %788 = vmatprep.subr.bf16.mxu0 0
    %789 = vmatpush1.bf16.msra.mxu0 0
    %790 = vmatprep.subr.bf16.mxu0 0
    %791 = vmatpush1.bf16.msra.mxu0 0
    %792 = vmatprep.subr.bf16.mxu0 0
    %793 = vmatpush1.bf16.msra.mxu0 0
    %794 = vmatprep.subr.bf16.mxu0 0
    %795 = vmatpush1.bf16.msra.mxu0 0
    %796 = vmatprep.subr.bf16.mxu0 0
    %797 = vmatpush1.bf16.msra.mxu0 0
    %798 = vmatprep.mubr.bf16.mxu0 0
    %799 = vmatmul.mubr.bf16.gmra.mrb[0].mxu0 %v654
    %v800 = vpop.f32.mrb[0].mxu0
    %v801 = vadd.f32 0.0, %v800
    %v802 = vpop.f32.mrb[0].mxu0
    %v803 = vadd.f32 0.0, %v802
    %v804 = vpop.f32.mrb[0].mxu0
    %v805 = vadd.f32 0.0, %v804
    %v806 = vpop.f32.mrb[0].mxu0
    %v807 = vadd.f32 0.0, %v806
    %808 = vmatprep.mubr.bf16.mxu0 0
    %809 = vmatmul.mubr.bf16.gmra.mrb[0].mxu0 %v655
    %v810 = vpop.f32.mrb[0].mxu0
    %v811 = vadd.f32 0.0, %v810
    %v812 = vpop.f32.mrb[0].mxu0
    %v813 = vadd.f32 0.0, %v812
    %v814 = vpop.f32.mrb[0].mxu0
    %v815 = vadd.f32 0.0, %v814
    %v816 = vpop.f32.mrb[0].mxu0
    %v817 = vadd.f32 0.0, %v816
    %818 = vmatprep.mubr.bf16.mxu0 0
    %819 = vmatmul.mubr.bf16.gmra.mrb[0].mxu0 %v656
    %v820 = vpop.f32.mrb[0].mxu0
    %v821 = vadd.f32 0.0, %v820
    %v822 = vpop.f32.mrb[0].mxu0
    %v823 = vadd.f32 0.0, %v822
    %v824 = vpop.f32.mrb[0].mxu0
    %v825 = vadd.f32 0.0, %v824
    %v826 = vpop.f32.mrb[0].mxu0
    %v827 = vadd.f32 0.0, %v826
    %828 = vmatprep.mubr.bf16.mxu0 0
    %829 = vmatmul.mubr.bf16.gmra.mrb[0].mxu0 %v657
    %v830 = vpop.f32.mrb[0].mxu0
    %v831 = vadd.f32 0.0, %v830
    %v832 = vpop.f32.mrb[0].mxu0
    %v833 = vadd.f32 0.0, %v832
    %v834 = vpop.f32.mrb[0].mxu0
    %v835 = vadd.f32 0.0, %v834
    %v836 = vpop.f32.mrb[0].mxu0
    %v837 = vadd.f32 0.0, %v836
    %838 = vmatprep.mubr.bf16.mxu0 0
    %839 = vmatmul.mubr.bf16.gmra.mrb[0].mxu0 %v658
    %v840 = vpop.f32.mrb[0].mxu0
    %v841 = vadd.f32 0.0, %v840
    %v842 = vpop.f32.mrb[0].mxu0
    %v843 = vadd.f32 0.0, %v842
    %v844 = vpop.f32.mrb[0].mxu0
    %v845 = vadd.f32 0.0, %v844
    %v846 = vpop.f32.mrb[0].mxu0
    %v847 = vadd.f32 0.0, %v846
    %848 = vmatprep.mubr.bf16.mxu0 0
    %849 = vmatmul.mubr.bf16.gmra.mrb[0].mxu0 %v659
    %v850 = vpop.f32.mrb[0].mxu0
    %v851 = vadd.f32 0.0, %v850
    %v852 = vpop.f32.mrb[0].mxu0
    %v853 = vadd.f32 0.0, %v852
    %v854 = vpop.f32.mrb[0].mxu0
    %v855 = vadd.f32 0.0, %v854
    %v856 = vpop.f32.mrb[0].mxu0
    %v857 = vadd.f32 0.0, %v856
    %858 = vmatprep.mubr.bf16.mxu0 0
    %859 = vmatmul.mubr.bf16.gmra.mrb[0].mxu0 %v660
    %v860 = vpop.f32.mrb[0].mxu0
    %v861 = vadd.f32 0.0, %v860
    %v862 = vpop.f32.mrb[0].mxu0
    %v863 = vadd.f32 0.0, %v862
    %v864 = vpop.f32.mrb[0].mxu0
    %v865 = vadd.f32 0.0, %v864
    %v866 = vpop.f32.mrb[0].mxu0
    %v867 = vadd.f32 0.0, %v866
    %868 = vmatprep.mubr.bf16.mxu0 0
    %869 = vmatmul.mubr.bf16.gmra.mrb[0].mxu0 %v661
    %v870 = vpop.f32.mrb[0].mxu0
    %v871 = vadd.f32 0.0, %v870
    %v872 = vpop.f32.mrb[0].mxu0
    %v873 = vadd.f32 0.0, %v872
    %v874 = vpop.f32.mrb[0].mxu0
    %v875 = vadd.f32 0.0, %v874
    %v876 = vpop.f32.mrb[0].mxu0
    %v877 = vadd.f32 0.0, %v876
    %878 = vmatprep.mubr.bf16.mxu0 0
    %879 = vmatmul.mubr.bf16.gmra.mrb[0].mxu0 %v662
    %v880 = vpop.f32.mrb[0].mxu0
    %v881 = vadd.f32 0.0, %v880
    %v882 = vpop.f32.mrb[0].mxu0
    %v883 = vadd.f32 0.0, %v882
    %v884 = vpop.f32.mrb[0].mxu0
    %v885 = vadd.f32 0.0, %v884
    %v886 = vpop.f32.mrb[0].mxu0
    %v887 = vadd.f32 0.0, %v886
    %888 = vmatprep.mubr.bf16.mxu0 0
    %889 = vmatmul.mubr.bf16.gmra.mrb[0].mxu0 %v663
    %v890 = vpop.f32.mrb[0].mxu0
    %v891 = vadd.f32 0.0, %v890
    %v892 = vpop.f32.mrb[0].mxu0
    %v893 = vadd.f32 0.0, %v892
    %v894 = vpop.f32.mrb[0].mxu0
    %v895 = vadd.f32 0.0, %v894
    %v896 = vpop.f32.mrb[0].mxu0
    %v897 = vadd.f32 0.0, %v896
    %898 = vmatprep.mubr.bf16.mxu0 0
    %899 = vmatmul.mubr.bf16.gmra.mrb[0].mxu0 %v664
    %v900 = vpop.f32.mrb[0].mxu0
    %v901 = vadd.f32 0.0, %v900
    %v902 = vpop.f32.mrb[0].mxu0
    %v903 = vadd.f32 0.0, %v902
    %v904 = vpop.f32.mrb[0].mxu0
    %v905 = vadd.f32 0.0, %v904
    %v906 = vpop.f32.mrb[0].mxu0
    %v907 = vadd.f32 0.0, %v906
    %908 = vmatprep.mubr.bf16.mxu0 0
    %909 = vmatmul.mubr.bf16.gmra.mrb[0].mxu0 %v665
    %v910 = vpop.f32.mrb[0].mxu0
    %v911 = vadd.f32 0.0, %v910
    %v912 = vpop.f32.mrb[0].mxu0
    %v913 = vadd.f32 0.0, %v912
    %v914 = vpop.f32.mrb[0].mxu0
    %v915 = vadd.f32 0.0, %v914
    %v916 = vpop.f32.mrb[0].mxu0
    %v917 = vadd.f32 0.0, %v916
    %918 = vmatprep.mubr.bf16.mxu0 0
    %919 = vmatmul.mubr.bf16.gmra.mrb[0].mxu0 %v666
    %v920 = vpop.f32.mrb[0].mxu0
    %v921 = vadd.f32 0.0, %v920
    %v922 = vpop.f32.mrb[0].mxu0
    %v923 = vadd.f32 0.0, %v922
    %v924 = vpop.f32.mrb[0].mxu0
    %v925 = vadd.f32 0.0, %v924
    %v926 = vpop.f32.mrb[0].mxu0
    %v927 = vadd.f32 0.0, %v926
    %928 = vmatprep.mubr.bf16.mxu0 0
    %929 = vmatmul.mubr.bf16.gmra.mrb[0].mxu0 %v667
    %v930 = vpop.f32.mrb[0].mxu0
    %v931 = vadd.f32 0.0, %v930
    %v932 = vpop.f32.mrb[0].mxu0
    %v933 = vadd.f32 0.0, %v932
    %v934 = vpop.f32.mrb[0].mxu0
    %v935 = vadd.f32 0.0, %v934
    %v936 = vpop.f32.mrb[0].mxu0
    %v937 = vadd.f32 0.0, %v936
    %938 = vmatprep.mubr.bf16.mxu0 0
    %939 = vmatmul.mubr.bf16.gmra.mrb[0].mxu0 %v668
    %v940 = vpop.f32.mrb[0].mxu0
    %v941 = vadd.f32 0.0, %v940
    %v942 = vpop.f32.mrb[0].mxu0
    %v943 = vadd.f32 0.0, %v942
    %v944 = vpop.f32.mrb[0].mxu0
    %v945 = vadd.f32 0.0, %v944
    %v946 = vpop.f32.mrb[0].mxu0
    %v947 = vadd.f32 0.0, %v946
    %948 = vmatprep.mubr.bf16.mxu0 0
    %949 = vmatmul.mubr.bf16.gmra.mrb[0].mxu0 %v669
    %v950 = vpop.f32.mrb[0].mxu0
    %v951 = vadd.f32 0.0, %v950
    %v952 = vpop.f32.mrb[0].mxu0
    %v953 = vadd.f32 0.0, %v952
    %v954 = vpop.f32.mrb[0].mxu0
    %v955 = vadd.f32 0.0, %v954
    %v956 = vpop.f32.mrb[0].mxu0
    %v957 = vadd.f32 0.0, %v956
    %958 = vdwg.mxu0
    %v959 = vld [vmem:[%s2] ss:$2 sm:$0x3]
    %s960 = scalar_lea.vmem %s2, 1
    %v961 = vld [vmem:[%s960] ss:$2 sm:$0x3]
    %v962 = vmul.f32 %v801, %v430
    %v963 = vmul.f32 %v803, %v430
    %v964 = vmul.f32 %v805, %v431
    %v965 = vmul.f32 %v807, %v431
    %v966 = vmul.f32 %v811, %v432
    %v967 = vmul.f32 %v813, %v432
    %v968 = vmul.f32 %v815, %v433
    %v969 = vmul.f32 %v817, %v433
    %v970 = vmul.f32 %v821, %v434
    %v971 = vmul.f32 %v823, %v434
    %v972 = vmul.f32 %v825, %v435
    %v973 = vmul.f32 %v827, %v435
    %v974 = vmul.f32 %v831, %v436
    %v975 = vmul.f32 %v833, %v436
    %v976 = vmul.f32 %v835, %v437
    %v977 = vmul.f32 %v837, %v437
    %v978 = vmul.f32 %v841, %v438
    %v979 = vmul.f32 %v843, %v438
    %v980 = vmul.f32 %v845, %v439
    %v981 = vmul.f32 %v847, %v439
    %v982 = vmul.f32 %v851, %v440
    %v983 = vmul.f32 %v853, %v440
    %v984 = vmul.f32 %v855, %v441
    %v985 = vmul.f32 %v857, %v441
    %v986 = vmul.f32 %v861, %v442
    %v987 = vmul.f32 %v863, %v442
    %v988 = vmul.f32 %v865, %v443
    %v989 = vmul.f32 %v867, %v443
    %v990 = vmul.f32 %v871, %v444
    %v991 = vmul.f32 %v873, %v444
    %v992 = vmul.f32 %v875, %v445
    %v993 = vmul.f32 %v877, %v445
    %v994 = vmul.f32 %v881, %v446
    %v995 = vmul.f32 %v883, %v446
    %v996 = vmul.f32 %v885, %v447
    %v997 = vmul.f32 %v887, %v447
    %v998 = vmul.f32 %v891, %v448
    %v999 = vmul.f32 %v893, %v448
    %v1000 = vmul.f32 %v895, %v449
    %v1001 = vmul.f32 %v897, %v449
    %v1002 = vmul.f32 %v901, %v450
    %v1003 = vmul.f32 %v903, %v450
    %v1004 = vmul.f32 %v905, %v451
    %v1005 = vmul.f32 %v907, %v451
    %v1006 = vmul.f32 %v911, %v452
    %v1007 = vmul.f32 %v913, %v452
    %v1008 = vmul.f32 %v915, %v453
    %v1009 = vmul.f32 %v917, %v453
    %v1010 = vmul.f32 %v921, %v454
    %v1011 = vmul.f32 %v923, %v454
    %v1012 = vmul.f32 %v925, %v455
    %v1013 = vmul.f32 %v927, %v455
    %v1014 = vmul.f32 %v931, %v456
    %v1015 = vmul.f32 %v933, %v456
    %v1016 = vmul.f32 %v935, %v457
    %v1017 = vmul.f32 %v937, %v457
    %v1018 = vmul.f32 %v941, %v458
    %v1019 = vmul.f32 %v943, %v458
    %v1020 = vmul.f32 %v945, %v459
    %v1021 = vmul.f32 %v947, %v459
    %v1022 = vmul.f32 %v951, %v460
    %v1023 = vmul.f32 %v953, %v460
    %v1024 = vmul.f32 %v955, %v461
    %v1025 = vmul.f32 %v957, %v461
    %v1027 = vlaneseq
    %v1028 = vshrl.u32 %v1027, 7
    %v1029 = vsub.s32 0, %v1028
    %v1030 = vrot.slane %v959, %v1029
    %v1031 = vlaneseq
    %v1032 = vshrl.u32 %v1031, 7
    %v1033 = vsub.s32 1, %v1032
    %v1034 = vrot.slane %v959, %v1033
    %v1037 = vmul.f32 %v962, %v1030
    %v1038 = vmul.f32 %v963, %v1034
    %v1039 = vmul.f32 %v964, %v1030
    %v1040 = vmul.f32 %v965, %v1034
    %v1041 = vmul.f32 %v966, %v1030
    %v1042 = vmul.f32 %v967, %v1034
    %v1043 = vmul.f32 %v968, %v1030
    %v1044 = vmul.f32 %v969, %v1034
    %v1045 = vmul.f32 %v970, %v1030
    %v1046 = vmul.f32 %v971, %v1034
    %v1047 = vmul.f32 %v972, %v1030
    %v1048 = vmul.f32 %v973, %v1034
    %v1049 = vmul.f32 %v974, %v1030
    %v1050 = vmul.f32 %v975, %v1034
    %v1051 = vmul.f32 %v976, %v1030
    %v1052 = vmul.f32 %v977, %v1034
    %v1053 = vmul.f32 %v978, %v1030
    %v1054 = vmul.f32 %v979, %v1034
    %v1055 = vmul.f32 %v980, %v1030
    %v1056 = vmul.f32 %v981, %v1034
    %v1057 = vmul.f32 %v982, %v1030
    %v1058 = vmul.f32 %v983, %v1034
    %v1059 = vmul.f32 %v984, %v1030
    %v1060 = vmul.f32 %v985, %v1034
    %v1061 = vmul.f32 %v986, %v1030
    %v1062 = vmul.f32 %v987, %v1034
    %v1063 = vmul.f32 %v988, %v1030
    %v1064 = vmul.f32 %v989, %v1034
    %v1065 = vmul.f32 %v990, %v1030
    %v1066 = vmul.f32 %v991, %v1034
    %v1067 = vmul.f32 %v992, %v1030
    %v1068 = vmul.f32 %v993, %v1034
    %v1069 = vmul.f32 %v994, %v1030
    %v1070 = vmul.f32 %v995, %v1034
    %v1071 = vmul.f32 %v996, %v1030
    %v1072 = vmul.f32 %v997, %v1034
    %v1073 = vmul.f32 %v998, %v1030
    %v1074 = vmul.f32 %v999, %v1034
    %v1075 = vmul.f32 %v1000, %v1030
    %v1076 = vmul.f32 %v1001, %v1034
    %v1077 = vmul.f32 %v1002, %v1030
    %v1078 = vmul.f32 %v1003, %v1034
    %v1079 = vmul.f32 %v1004, %v1030
    %v1080 = vmul.f32 %v1005, %v1034
    %v1081 = vmul.f32 %v1006, %v1030
    %v1082 = vmul.f32 %v1007, %v1034
    %v1083 = vmul.f32 %v1008, %v1030
    %v1084 = vmul.f32 %v1009, %v1034
    %v1085 = vmul.f32 %v1010, %v1030
    %v1086 = vmul.f32 %v1011, %v1034
    %v1087 = vmul.f32 %v1012, %v1030
    %v1088 = vmul.f32 %v1013, %v1034
    %v1089 = vmul.f32 %v1014, %v1030
    %v1090 = vmul.f32 %v1015, %v1034
    %v1091 = vmul.f32 %v1016, %v1030
    %v1092 = vmul.f32 %v1017, %v1034
    %v1093 = vmul.f32 %v1018, %v1030
    %v1094 = vmul.f32 %v1019, %v1034
    %v1095 = vmul.f32 %v1020, %v1030
    %v1096 = vmul.f32 %v1021, %v1034
    %v1097 = vmul.f32 %v1022, %v1030
    %v1098 = vmul.f32 %v1023, %v1034
    %v1099 = vmul.f32 %v1024, %v1030
    %v1100 = vmul.f32 %v1025, %v1034
    %v1102 = vlaneseq
    %v1103 = vshrl.u32 %v1102, 7
    %v1104 = vsub.s32 0, %v1103
    %v1105 = vrot.slane %v961, %v1104
    %v1106 = vlaneseq
    %v1107 = vshrl.u32 %v1106, 7
    %v1108 = vsub.s32 1, %v1107
    %v1109 = vrot.slane %v961, %v1108
    %v1112 = vadd.f32 %v1037, %v1105
    %v1113 = vadd.f32 %v1038, %v1109
    %v1114 = vadd.f32 %v1039, %v1105
    %v1115 = vadd.f32 %v1040, %v1109
    %v1116 = vadd.f32 %v1041, %v1105
    %v1117 = vadd.f32 %v1042, %v1109
    %v1118 = vadd.f32 %v1043, %v1105
    %v1119 = vadd.f32 %v1044, %v1109
    %v1120 = vadd.f32 %v1045, %v1105
    %v1121 = vadd.f32 %v1046, %v1109
    %v1122 = vadd.f32 %v1047, %v1105
    %v1123 = vadd.f32 %v1048, %v1109
    %v1124 = vadd.f32 %v1049, %v1105
    %v1125 = vadd.f32 %v1050, %v1109
    %v1126 = vadd.f32 %v1051, %v1105
    %v1127 = vadd.f32 %v1052, %v1109
    %v1128 = vadd.f32 %v1053, %v1105
    %v1129 = vadd.f32 %v1054, %v1109
    %v1130 = vadd.f32 %v1055, %v1105
    %v1131 = vadd.f32 %v1056, %v1109
    %v1132 = vadd.f32 %v1057, %v1105
    %v1133 = vadd.f32 %v1058, %v1109
    %v1134 = vadd.f32 %v1059, %v1105
    %v1135 = vadd.f32 %v1060, %v1109
    %v1136 = vadd.f32 %v1061, %v1105
    %v1137 = vadd.f32 %v1062, %v1109
    %v1138 = vadd.f32 %v1063, %v1105
    %v1139 = vadd.f32 %v1064, %v1109
    %v1140 = vadd.f32 %v1065, %v1105
    %v1141 = vadd.f32 %v1066, %v1109
    %v1142 = vadd.f32 %v1067, %v1105
    %v1143 = vadd.f32 %v1068, %v1109
    %v1144 = vadd.f32 %v1069, %v1105
    %v1145 = vadd.f32 %v1070, %v1109
    %v1146 = vadd.f32 %v1071, %v1105
    %v1147 = vadd.f32 %v1072, %v1109
    %v1148 = vadd.f32 %v1073, %v1105
    %v1149 = vadd.f32 %v1074, %v1109
    %v1150 = vadd.f32 %v1075, %v1105
    %v1151 = vadd.f32 %v1076, %v1109
    %v1152 = vadd.f32 %v1077, %v1105
    %v1153 = vadd.f32 %v1078, %v1109
    %v1154 = vadd.f32 %v1079, %v1105
    %v1155 = vadd.f32 %v1080, %v1109
    %v1156 = vadd.f32 %v1081, %v1105
    %v1157 = vadd.f32 %v1082, %v1109
    %v1158 = vadd.f32 %v1083, %v1105
    %v1159 = vadd.f32 %v1084, %v1109
    %v1160 = vadd.f32 %v1085, %v1105
    %v1161 = vadd.f32 %v1086, %v1109
    %v1162 = vadd.f32 %v1087, %v1105
    %v1163 = vadd.f32 %v1088, %v1109
    %v1164 = vadd.f32 %v1089, %v1105
    %v1165 = vadd.f32 %v1090, %v1109
    %v1166 = vadd.f32 %v1091, %v1105
    %v1167 = vadd.f32 %v1092, %v1109
    %v1168 = vadd.f32 %v1093, %v1105
    %v1169 = vadd.f32 %v1094, %v1109
    %v1170 = vadd.f32 %v1095, %v1105
    %v1171 = vadd.f32 %v1096, %v1109
    %v1172 = vadd.f32 %v1097, %v1105
    %v1173 = vadd.f32 %v1098, %v1109
    %v1174 = vadd.f32 %v1099, %v1105
    %v1175 = vadd.f32 %v1100, %v1109
    %1176 = vmatprep.subr.mxu0 0.0
    %1177 = vmatpush1.msra.mxu0 1.0
    %1178 = vmatprep.subr.mxu0 0.0
    %1179 = vmatpush1.msra.mxu0 1.0
    %1180 = vmatprep.subr.mxu0 0.0
    %1181 = vmatpush1.msra.mxu0 1.0
    %1182 = vmatprep.subr.mxu0 0.0
    %1183 = vmatpush1.msra.mxu0 1.0
    %1184 = vmatprep.subr.mxu0 0.0
    %1185 = vmatpush1.msra.mxu0 1.0
    %1186 = vmatprep.subr.mxu0 0.0
    %1187 = vmatpush1.msra.mxu0 1.0
    %1188 = vmatprep.subr.mxu0 0.0
    %1189 = vmatpush1.msra.mxu0 1.0
    %1190 = vmatprep.subr.mxu0 0.0
    %1191 = vmatpush1.msra.mxu0 1.0
    %1192 = vmatprep.subr.mxu0 0.0
    %1193 = vmatpush1.msra.mxu0 1.0
    %1194 = vmatprep.subr.mxu0 0.0
    %1195 = vmatpush1.msra.mxu0 1.0
    %1196 = vmatprep.subr.mxu0 0.0
    %1197 = vmatpush1.msra.mxu0 1.0
    %1198 = vmatprep.subr.mxu0 0.0
    %1199 = vmatpush1.msra.mxu0 1.0
    %1200 = vmatprep.subr.mxu0 0.0
    %1201 = vmatpush1.msra.mxu0 1.0
    %1202 = vmatprep.subr.mxu0 0.0
    %1203 = vmatpush1.msra.mxu0 1.0
    %1204 = vmatprep.subr.mxu0 0.0
    %1205 = vmatpush1.msra.mxu0 1.0
    %1206 = vmatprep.subr.mxu0 0.0
    %1207 = vmatpush1.msra.mxu0 1.0
    %1208 = vmatprep.subr.mxu0 0.0
    %1209 = vmatpush1.msra.mxu0 1.0
    %1210 = vmatprep.subr.mxu0 0.0
    %1211 = vmatpush1.msra.mxu0 1.0
    %1212 = vmatprep.subr.mxu0 0.0
    %1213 = vmatpush1.msra.mxu0 1.0
    %1214 = vmatprep.subr.mxu0 0.0
    %1215 = vmatpush1.msra.mxu0 1.0
    %1216 = vmatprep.subr.mxu0 0.0
    %1217 = vmatpush1.msra.mxu0 1.0
    %1218 = vmatprep.subr.mxu0 0.0
    %1219 = vmatpush1.msra.mxu0 1.0
    %1220 = vmatprep.subr.mxu0 0.0
    %1221 = vmatpush1.msra.mxu0 1.0
    %1222 = vmatprep.subr.mxu0 0.0
    %1223 = vmatpush1.msra.mxu0 1.0
    %1224 = vmatprep.subr.mxu0 0.0
    %1225 = vmatpush1.msra.mxu0 1.0
    %1226 = vmatprep.subr.mxu0 0.0
    %1227 = vmatpush1.msra.mxu0 1.0
    %1228 = vmatprep.subr.mxu0 0.0
    %1229 = vmatpush1.msra.mxu0 1.0
    %1230 = vmatprep.subr.mxu0 0.0
    %1231 = vmatpush1.msra.mxu0 1.0
    %1232 = vmatprep.subr.mxu0 0.0
    %1233 = vmatpush1.msra.mxu0 1.0
    %1234 = vmatprep.subr.mxu0 0.0
    %1235 = vmatpush1.msra.mxu0 1.0
    %1236 = vmatprep.subr.mxu0 0.0
    %1237 = vmatpush1.msra.mxu0 1.0
    %1238 = vmatprep.subr.mxu0 0.0
    %1239 = vmatpush1.msra.mxu0 1.0
    %1240 = vmatprep.mubr.f32.mxu0 %v1113
    %1241 = vmatmul.mubr.f32.gmra.mrb[0].mxu0 %v1112
    %v1242 = vpop.f32.mrb[0].mxu0
    %v1243 = vadd.f32 0.0, %v1242
    %v1244 = vpop.f32.mrb[0].mxu0
    %1245 = vmatprep.mubr.f32.mxu0 %v1115
    %1246 = vmatmul.mubr.f32.gmra.mrb[0].mxu0 %v1114
    %v1247 = vpop.f32.mrb[0].mxu0
    %v1248 = vadd.f32 0.0, %v1247
    %v1249 = vpop.f32.mrb[0].mxu0
    %1250 = vmatprep.mubr.f32.mxu0 %v1117
    %1251 = vmatmul.mubr.f32.gmra.mrb[0].mxu0 %v1116
    %v1252 = vpop.f32.mrb[0].mxu0
    %v1253 = vadd.f32 0.0, %v1252
    %v1254 = vpop.f32.mrb[0].mxu0
    %1255 = vmatprep.mubr.f32.mxu0 %v1119
    %1256 = vmatmul.mubr.f32.gmra.mrb[0].mxu0 %v1118
    %v1257 = vpop.f32.mrb[0].mxu0
    %v1258 = vadd.f32 0.0, %v1257
    %v1259 = vpop.f32.mrb[0].mxu0
    %1260 = vmatprep.mubr.f32.mxu0 %v1121
    %1261 = vmatmul.mubr.f32.gmra.mrb[0].mxu0 %v1120
    %v1262 = vpop.f32.mrb[0].mxu0
    %v1263 = vadd.f32 0.0, %v1262
    %v1264 = vpop.f32.mrb[0].mxu0
    %1265 = vmatprep.mubr.f32.mxu0 %v1123
    %1266 = vmatmul.mubr.f32.gmra.mrb[0].mxu0 %v1122
    %v1267 = vpop.f32.mrb[0].mxu0
    %v1268 = vadd.f32 0.0, %v1267
    %v1269 = vpop.f32.mrb[0].mxu0
    %1270 = vmatprep.mubr.f32.mxu0 %v1125
    %1271 = vmatmul.mubr.f32.gmra.mrb[0].mxu0 %v1124
    %v1272 = vpop.f32.mrb[0].mxu0
    %v1273 = vadd.f32 0.0, %v1272
    %v1274 = vpop.f32.mrb[0].mxu0
    %1275 = vmatprep.mubr.f32.mxu0 %v1127
    %1276 = vmatmul.mubr.f32.gmra.mrb[0].mxu0 %v1126
    %v1277 = vpop.f32.mrb[0].mxu0
    %v1278 = vadd.f32 0.0, %v1277
    %v1279 = vpop.f32.mrb[0].mxu0
    %1280 = vmatprep.mubr.f32.mxu0 %v1129
    %1281 = vmatmul.mubr.f32.gmra.mrb[0].mxu0 %v1128
    %v1282 = vpop.f32.mrb[0].mxu0
    %v1283 = vadd.f32 0.0, %v1282
    %v1284 = vpop.f32.mrb[0].mxu0
    %1285 = vmatprep.mubr.f32.mxu0 %v1131
    %1286 = vmatmul.mubr.f32.gmra.mrb[0].mxu0 %v1130
    %v1287 = vpop.f32.mrb[0].mxu0
    %v1288 = vadd.f32 0.0, %v1287
    %v1289 = vpop.f32.mrb[0].mxu0
    %1290 = vmatprep.mubr.f32.mxu0 %v1133
    %1291 = vmatmul.mubr.f32.gmra.mrb[0].mxu0 %v1132
    %v1292 = vpop.f32.mrb[0].mxu0
    %v1293 = vadd.f32 0.0, %v1292
    %v1294 = vpop.f32.mrb[0].mxu0
    %1295 = vmatprep.mubr.f32.mxu0 %v1135
    %1296 = vmatmul.mubr.f32.gmra.mrb[0].mxu0 %v1134
    %v1297 = vpop.f32.mrb[0].mxu0
    %v1298 = vadd.f32 0.0, %v1297
    %v1299 = vpop.f32.mrb[0].mxu0
    %1300 = vmatprep.mubr.f32.mxu0 %v1137
    %1301 = vmatmul.mubr.f32.gmra.mrb[0].mxu0 %v1136
    %v1302 = vpop.f32.mrb[0].mxu0
    %v1303 = vadd.f32 0.0, %v1302
    %v1304 = vpop.f32.mrb[0].mxu0
    %1305 = vmatprep.mubr.f32.mxu0 %v1139
    %1306 = vmatmul.mubr.f32.gmra.mrb[0].mxu0 %v1138
    %v1307 = vpop.f32.mrb[0].mxu0
    %v1308 = vadd.f32 0.0, %v1307
    %v1309 = vpop.f32.mrb[0].mxu0
    %1310 = vmatprep.mubr.f32.mxu0 %v1141
    %1311 = vmatmul.mubr.f32.gmra.mrb[0].mxu0 %v1140
    %v1312 = vpop.f32.mrb[0].mxu0
    %v1313 = vadd.f32 0.0, %v1312
    %v1314 = vpop.f32.mrb[0].mxu0
    %1315 = vmatprep.mubr.f32.mxu0 %v1143
    %1316 = vmatmul.mubr.f32.gmra.mrb[0].mxu0 %v1142
    %v1317 = vpop.f32.mrb[0].mxu0
    %v1318 = vadd.f32 0.0, %v1317
    %v1319 = vpop.f32.mrb[0].mxu0
    %1320 = vmatprep.mubr.f32.mxu0 %v1145
    %1321 = vmatmul.mubr.f32.gmra.mrb[0].mxu0 %v1144
    %v1322 = vpop.f32.mrb[0].mxu0
    %v1323 = vadd.f32 0.0, %v1322
    %v1324 = vpop.f32.mrb[0].mxu0
    %1325 = vmatprep.mubr.f32.mxu0 %v1147
    %1326 = vmatmul.mubr.f32.gmra.mrb[0].mxu0 %v1146
    %v1327 = vpop.f32.mrb[0].mxu0
    %v1328 = vadd.f32 0.0, %v1327
    %v1329 = vpop.f32.mrb[0].mxu0
    %1330 = vmatprep.mubr.f32.mxu0 %v1149
    %1331 = vmatmul.mubr.f32.gmra.mrb[0].mxu0 %v1148
    %v1332 = vpop.f32.mrb[0].mxu0
    %v1333 = vadd.f32 0.0, %v1332
    %v1334 = vpop.f32.mrb[0].mxu0
    %1335 = vmatprep.mubr.f32.mxu0 %v1151
    %1336 = vmatmul.mubr.f32.gmra.mrb[0].mxu0 %v1150
    %v1337 = vpop.f32.mrb[0].mxu0
    %v1338 = vadd.f32 0.0, %v1337
    %v1339 = vpop.f32.mrb[0].mxu0
    %1340 = vmatprep.mubr.f32.mxu0 %v1153
    %1341 = vmatmul.mubr.f32.gmra.mrb[0].mxu0 %v1152
    %v1342 = vpop.f32.mrb[0].mxu0
    %v1343 = vadd.f32 0.0, %v1342
    %v1344 = vpop.f32.mrb[0].mxu0
    %1345 = vmatprep.mubr.f32.mxu0 %v1155
    %1346 = vmatmul.mubr.f32.gmra.mrb[0].mxu0 %v1154
    %v1347 = vpop.f32.mrb[0].mxu0
    %v1348 = vadd.f32 0.0, %v1347
    %v1349 = vpop.f32.mrb[0].mxu0
    %1350 = vmatprep.mubr.f32.mxu0 %v1157
    %1351 = vmatmul.mubr.f32.gmra.mrb[0].mxu0 %v1156
    %v1352 = vpop.f32.mrb[0].mxu0
    %v1353 = vadd.f32 0.0, %v1352
    %v1354 = vpop.f32.mrb[0].mxu0
    %1355 = vmatprep.mubr.f32.mxu0 %v1159
    %1356 = vmatmul.mubr.f32.gmra.mrb[0].mxu0 %v1158
    %v1357 = vpop.f32.mrb[0].mxu0
    %v1358 = vadd.f32 0.0, %v1357
    %v1359 = vpop.f32.mrb[0].mxu0
    %1360 = vmatprep.mubr.f32.mxu0 %v1161
    %1361 = vmatmul.mubr.f32.gmra.mrb[0].mxu0 %v1160
    %v1362 = vpop.f32.mrb[0].mxu0
    %v1363 = vadd.f32 0.0, %v1362
    %v1364 = vpop.f32.mrb[0].mxu0
    %1365 = vmatprep.mubr.f32.mxu0 %v1163
    %1366 = vmatmul.mubr.f32.gmra.mrb[0].mxu0 %v1162
    %v1367 = vpop.f32.mrb[0].mxu0
    %v1368 = vadd.f32 0.0, %v1367
    %v1369 = vpop.f32.mrb[0].mxu0
    %1370 = vmatprep.mubr.f32.mxu0 %v1165
    %1371 = vmatmul.mubr.f32.gmra.mrb[0].mxu0 %v1164
    %v1372 = vpop.f32.mrb[0].mxu0
    %v1373 = vadd.f32 0.0, %v1372
    %v1374 = vpop.f32.mrb[0].mxu0
    %1375 = vmatprep.mubr.f32.mxu0 %v1167
    %1376 = vmatmul.mubr.f32.gmra.mrb[0].mxu0 %v1166
    %v1377 = vpop.f32.mrb[0].mxu0
    %v1378 = vadd.f32 0.0, %v1377
    %v1379 = vpop.f32.mrb[0].mxu0
    %1380 = vmatprep.mubr.f32.mxu0 %v1169
    %1381 = vmatmul.mubr.f32.gmra.mrb[0].mxu0 %v1168
    %v1382 = vpop.f32.mrb[0].mxu0
    %v1383 = vadd.f32 0.0, %v1382
    %v1384 = vpop.f32.mrb[0].mxu0
    %1385 = vmatprep.mubr.f32.mxu0 %v1171
    %1386 = vmatmul.mubr.f32.gmra.mrb[0].mxu0 %v1170
    %v1387 = vpop.f32.mrb[0].mxu0
    %v1388 = vadd.f32 0.0, %v1387
    %v1389 = vpop.f32.mrb[0].mxu0
    %1390 = vmatprep.mubr.f32.mxu0 %v1173
    %1391 = vmatmul.mubr.f32.gmra.mrb[0].mxu0 %v1172
    %v1392 = vpop.f32.mrb[0].mxu0
    %v1393 = vadd.f32 0.0, %v1392
    %v1394 = vpop.f32.mrb[0].mxu0
    %1395 = vmatprep.mubr.f32.mxu0 %v1175
    %1396 = vmatmul.mubr.f32.gmra.mrb[0].mxu0 %v1174
    %v1397 = vpop.f32.mrb[0].mxu0
    %v1398 = vadd.f32 0.0, %v1397
    %v1399 = vpop.f32.mrb[0].mxu0
    %1400 = vdwg.mxu0
    %v1401 = vmul.f32 %v1243, 0.00390625
    %v1402 = vmul.f32 %v1248, 0.00390625
    %v1403 = vmul.f32 %v1253, 0.00390625
    %v1404 = vmul.f32 %v1258, 0.00390625
    %v1405 = vmul.f32 %v1263, 0.00390625
    %v1406 = vmul.f32 %v1268, 0.00390625
    %v1407 = vmul.f32 %v1273, 0.00390625
    %v1408 = vmul.f32 %v1278, 0.00390625
    %v1409 = vmul.f32 %v1283, 0.00390625
    %v1410 = vmul.f32 %v1288, 0.00390625
    %v1411 = vmul.f32 %v1293, 0.00390625
    %v1412 = vmul.f32 %v1298, 0.00390625
    %v1413 = vmul.f32 %v1303, 0.00390625
    %v1414 = vmul.f32 %v1308, 0.00390625
    %v1415 = vmul.f32 %v1313, 0.00390625
    %v1416 = vmul.f32 %v1318, 0.00390625
    %v1417 = vmul.f32 %v1323, 0.00390625
    %v1418 = vmul.f32 %v1328, 0.00390625
    %v1419 = vmul.f32 %v1333, 0.00390625
    %v1420 = vmul.f32 %v1338, 0.00390625
    %v1421 = vmul.f32 %v1343, 0.00390625
    %v1422 = vmul.f32 %v1348, 0.00390625
    %v1423 = vmul.f32 %v1353, 0.00390625
    %v1424 = vmul.f32 %v1358, 0.00390625
    %v1425 = vmul.f32 %v1363, 0.00390625
    %v1426 = vmul.f32 %v1368, 0.00390625
    %v1427 = vmul.f32 %v1373, 0.00390625
    %v1428 = vmul.f32 %v1378, 0.00390625
    %v1429 = vmul.f32 %v1383, 0.00390625
    %v1430 = vmul.f32 %v1388, 0.00390625
    %v1431 = vmul.f32 %v1393, 0.00390625
    %v1432 = vmul.f32 %v1398, 0.00390625
    %1434 = vset.pattern.permute.xlu0 0
    %1435 = vperm.xlu0 %1434, %v1401
    %v1436 = vpop.permute.xlu0 %1435
    %1439 = vset.pattern.permute.xlu0 0
    %1440 = vperm.xlu0 %1439, %v1402
    %v1441 = vpop.permute.xlu0 %1440
    %1444 = vset.pattern.permute.xlu0 0
    %1445 = vperm.xlu0 %1444, %v1403
    %v1446 = vpop.permute.xlu0 %1445
    %1449 = vset.pattern.permute.xlu0 0
    %1450 = vperm.xlu0 %1449, %v1404
    %v1451 = vpop.permute.xlu0 %1450
    %1454 = vset.pattern.permute.xlu0 0
    %1455 = vperm.xlu0 %1454, %v1405
    %v1456 = vpop.permute.xlu0 %1455
    %1459 = vset.pattern.permute.xlu0 0
    %1460 = vperm.xlu0 %1459, %v1406
    %v1461 = vpop.permute.xlu0 %1460
    %1464 = vset.pattern.permute.xlu0 0
    %1465 = vperm.xlu0 %1464, %v1407
    %v1466 = vpop.permute.xlu0 %1465
    %1469 = vset.pattern.permute.xlu0 0
    %1470 = vperm.xlu0 %1469, %v1408
    %v1471 = vpop.permute.xlu0 %1470
    %1474 = vset.pattern.permute.xlu0 0
    %1475 = vperm.xlu0 %1474, %v1409
    %v1476 = vpop.permute.xlu0 %1475
    %1479 = vset.pattern.permute.xlu0 0
    %1480 = vperm.xlu0 %1479, %v1410
    %v1481 = vpop.permute.xlu0 %1480
    %1484 = vset.pattern.permute.xlu0 0
    %1485 = vperm.xlu0 %1484, %v1411
    %v1486 = vpop.permute.xlu0 %1485
    %1489 = vset.pattern.permute.xlu0 0
    %1490 = vperm.xlu0 %1489, %v1412
    %v1491 = vpop.permute.xlu0 %1490
    %1494 = vset.pattern.permute.xlu0 0
    %1495 = vperm.xlu0 %1494, %v1413
    %v1496 = vpop.permute.xlu0 %1495
    %1499 = vset.pattern.permute.xlu0 0
    %1500 = vperm.xlu0 %1499, %v1414
    %v1501 = vpop.permute.xlu0 %1500
    %1504 = vset.pattern.permute.xlu0 0
    %1505 = vperm.xlu0 %1504, %v1415
    %v1506 = vpop.permute.xlu0 %1505
    %1509 = vset.pattern.permute.xlu0 0
    %1510 = vperm.xlu0 %1509, %v1416
    %v1511 = vpop.permute.xlu0 %1510
    %1514 = vset.pattern.permute.xlu0 0
    %1515 = vperm.xlu0 %1514, %v1417
    %v1516 = vpop.permute.xlu0 %1515
    %1519 = vset.pattern.permute.xlu0 0
    %1520 = vperm.xlu0 %1519, %v1418
    %v1521 = vpop.permute.xlu0 %1520
    %1524 = vset.pattern.permute.xlu0 0
    %1525 = vperm.xlu0 %1524, %v1419
    %v1526 = vpop.permute.xlu0 %1525
    %1529 = vset.pattern.permute.xlu0 0
    %1530 = vperm.xlu0 %1529, %v1420
    %v1531 = vpop.permute.xlu0 %1530
    %1534 = vset.pattern.permute.xlu0 0
    %1535 = vperm.xlu0 %1534, %v1421
    %v1536 = vpop.permute.xlu0 %1535
    %1539 = vset.pattern.permute.xlu0 0
    %1540 = vperm.xlu0 %1539, %v1422
    %v1541 = vpop.permute.xlu0 %1540
    %1544 = vset.pattern.permute.xlu0 0
    %1545 = vperm.xlu0 %1544, %v1423
    %v1546 = vpop.permute.xlu0 %1545
    %1549 = vset.pattern.permute.xlu0 0
    %1550 = vperm.xlu0 %1549, %v1424
    %v1551 = vpop.permute.xlu0 %1550
    %1554 = vset.pattern.permute.xlu0 0
    %1555 = vperm.xlu0 %1554, %v1425
    %v1556 = vpop.permute.xlu0 %1555
    %1559 = vset.pattern.permute.xlu0 0
    %1560 = vperm.xlu0 %1559, %v1426
    %v1561 = vpop.permute.xlu0 %1560
    %1564 = vset.pattern.permute.xlu0 0
    %1565 = vperm.xlu0 %1564, %v1427
    %v1566 = vpop.permute.xlu0 %1565
    %1569 = vset.pattern.permute.xlu0 0
    %1570 = vperm.xlu0 %1569, %v1428
    %v1571 = vpop.permute.xlu0 %1570
    %1574 = vset.pattern.permute.xlu0 0
    %1575 = vperm.xlu0 %1574, %v1429
    %v1576 = vpop.permute.xlu0 %1575
    %1579 = vset.pattern.permute.xlu0 0
    %1580 = vperm.xlu0 %1579, %v1430
    %v1581 = vpop.permute.xlu0 %1580
    %1584 = vset.pattern.permute.xlu0 0
    %1585 = vperm.xlu0 %1584, %v1431
    %v1586 = vpop.permute.xlu0 %1585
    %1589 = vset.pattern.permute.xlu0 0
    %1590 = vperm.xlu0 %1589, %v1432
    %v1591 = vpop.permute.xlu0 %1590
    %v1593 = vsub.f32 %v1112, %v1436
    %v1594 = vsub.f32 %v1113, %v1436
    %v1595 = vsub.f32 %v1114, %v1441
    %v1596 = vsub.f32 %v1115, %v1441
    %v1597 = vsub.f32 %v1116, %v1446
    %v1598 = vsub.f32 %v1117, %v1446
    %v1599 = vsub.f32 %v1118, %v1451
    %v1600 = vsub.f32 %v1119, %v1451
    %v1601 = vsub.f32 %v1120, %v1456
    %v1602 = vsub.f32 %v1121, %v1456
    %v1603 = vsub.f32 %v1122, %v1461
    %v1604 = vsub.f32 %v1123, %v1461
    %v1605 = vsub.f32 %v1124, %v1466
    %v1606 = vsub.f32 %v1125, %v1466
    %v1607 = vsub.f32 %v1126, %v1471
    %v1608 = vsub.f32 %v1127, %v1471
    %v1609 = vsub.f32 %v1128, %v1476
    %v1610 = vsub.f32 %v1129, %v1476
    %v1611 = vsub.f32 %v1130, %v1481
    %v1612 = vsub.f32 %v1131, %v1481
    %v1613 = vsub.f32 %v1132, %v1486
    %v1614 = vsub.f32 %v1133, %v1486
    %v1615 = vsub.f32 %v1134, %v1491
    %v1616 = vsub.f32 %v1135, %v1491
    %v1617 = vsub.f32 %v1136, %v1496
    %v1618 = vsub.f32 %v1137, %v1496
    %v1619 = vsub.f32 %v1138, %v1501
    %v1620 = vsub.f32 %v1139, %v1501
    %v1621 = vsub.f32 %v1140, %v1506
    %v1622 = vsub.f32 %v1141, %v1506
    %v1623 = vsub.f32 %v1142, %v1511
    %v1624 = vsub.f32 %v1143, %v1511
    %v1625 = vsub.f32 %v1144, %v1516
    %v1626 = vsub.f32 %v1145, %v1516
    %v1627 = vsub.f32 %v1146, %v1521
    %v1628 = vsub.f32 %v1147, %v1521
    %v1629 = vsub.f32 %v1148, %v1526
    %v1630 = vsub.f32 %v1149, %v1526
    %v1631 = vsub.f32 %v1150, %v1531
    %v1632 = vsub.f32 %v1151, %v1531
    %v1633 = vsub.f32 %v1152, %v1536
    %v1634 = vsub.f32 %v1153, %v1536
    %v1635 = vsub.f32 %v1154, %v1541
    %v1636 = vsub.f32 %v1155, %v1541
    %v1637 = vsub.f32 %v1156, %v1546
    %v1638 = vsub.f32 %v1157, %v1546
    %v1639 = vsub.f32 %v1158, %v1551
    %v1640 = vsub.f32 %v1159, %v1551
    %v1641 = vsub.f32 %v1160, %v1556
    %v1642 = vsub.f32 %v1161, %v1556
    %v1643 = vsub.f32 %v1162, %v1561
    %v1644 = vsub.f32 %v1163, %v1561
    %v1645 = vsub.f32 %v1164, %v1566
    %v1646 = vsub.f32 %v1165, %v1566
    %v1647 = vsub.f32 %v1166, %v1571
    %v1648 = vsub.f32 %v1167, %v1571
    %v1649 = vsub.f32 %v1168, %v1576
    %v1650 = vsub.f32 %v1169, %v1576
    %v1651 = vsub.f32 %v1170, %v1581
    %v1652 = vsub.f32 %v1171, %v1581
    %v1653 = vsub.f32 %v1172, %v1586
    %v1654 = vsub.f32 %v1173, %v1586
    %v1655 = vsub.f32 %v1174, %v1591
    %v1656 = vsub.f32 %v1175, %v1591
    %v1657 = vmul.f32 %v1593, %v1593
    %v1658 = vmul.f32 %v1594, %v1594
    %v1659 = vmul.f32 %v1595, %v1595
    %v1660 = vmul.f32 %v1596, %v1596
    %v1661 = vmul.f32 %v1597, %v1597
    %v1662 = vmul.f32 %v1598, %v1598
    %v1663 = vmul.f32 %v1599, %v1599
    %v1664 = vmul.f32 %v1600, %v1600
    %v1665 = vmul.f32 %v1601, %v1601
    %v1666 = vmul.f32 %v1602, %v1602
    %v1667 = vmul.f32 %v1603, %v1603
    %v1668 = vmul.f32 %v1604, %v1604
    %v1669 = vmul.f32 %v1605, %v1605
    %v1670 = vmul.f32 %v1606, %v1606
    %v1671 = vmul.f32 %v1607, %v1607
    %v1672 = vmul.f32 %v1608, %v1608
    %v1673 = vmul.f32 %v1609, %v1609
    %v1674 = vmul.f32 %v1610, %v1610
    %v1675 = vmul.f32 %v1611, %v1611
    %v1676 = vmul.f32 %v1612, %v1612
    %v1677 = vmul.f32 %v1613, %v1613
    %v1678 = vmul.f32 %v1614, %v1614
    %v1679 = vmul.f32 %v1615, %v1615
    %v1680 = vmul.f32 %v1616, %v1616
    %v1681 = vmul.f32 %v1617, %v1617
    %v1682 = vmul.f32 %v1618, %v1618
    %v1683 = vmul.f32 %v1619, %v1619
    %v1684 = vmul.f32 %v1620, %v1620
    %v1685 = vmul.f32 %v1621, %v1621
    %v1686 = vmul.f32 %v1622, %v1622
    %v1687 = vmul.f32 %v1623, %v1623
    %v1688 = vmul.f32 %v1624, %v1624
    %v1689 = vmul.f32 %v1625, %v1625
    %v1690 = vmul.f32 %v1626, %v1626
    %v1691 = vmul.f32 %v1627, %v1627
    %v1692 = vmul.f32 %v1628, %v1628
    %v1693 = vmul.f32 %v1629, %v1629
    %v1694 = vmul.f32 %v1630, %v1630
    %v1695 = vmul.f32 %v1631, %v1631
    %v1696 = vmul.f32 %v1632, %v1632
    %v1697 = vmul.f32 %v1633, %v1633
    %v1698 = vmul.f32 %v1634, %v1634
    %v1699 = vmul.f32 %v1635, %v1635
    %v1700 = vmul.f32 %v1636, %v1636
    %v1701 = vmul.f32 %v1637, %v1637
    %v1702 = vmul.f32 %v1638, %v1638
    %v1703 = vmul.f32 %v1639, %v1639
    %v1704 = vmul.f32 %v1640, %v1640
    %v1705 = vmul.f32 %v1641, %v1641
    %v1706 = vmul.f32 %v1642, %v1642
    %v1707 = vmul.f32 %v1643, %v1643
    %v1708 = vmul.f32 %v1644, %v1644
    %v1709 = vmul.f32 %v1645, %v1645
    %v1710 = vmul.f32 %v1646, %v1646
    %v1711 = vmul.f32 %v1647, %v1647
    %v1712 = vmul.f32 %v1648, %v1648
    %v1713 = vmul.f32 %v1649, %v1649
    %v1714 = vmul.f32 %v1650, %v1650
    %v1715 = vmul.f32 %v1651, %v1651
    %v1716 = vmul.f32 %v1652, %v1652
    %v1717 = vmul.f32 %v1653, %v1653
    %v1718 = vmul.f32 %v1654, %v1654
    %v1719 = vmul.f32 %v1655, %v1655
    %v1720 = vmul.f32 %v1656, %v1656
    %1721 = vmatprep.subr.mxu0 0.0
    %1722 = vmatpush1.msra.mxu0 1.0
    %1723 = vmatprep.subr.mxu0 0.0
    %1724 = vmatpush1.msra.mxu0 1.0
    %1725 = vmatprep.subr.mxu0 0.0
    %1726 = vmatpush1.msra.mxu0 1.0
    %1727 = vmatprep.subr.mxu0 0.0
    %1728 = vmatpush1.msra.mxu0 1.0
    %1729 = vmatprep.subr.mxu0 0.0
    %1730 = vmatpush1.msra.mxu0 1.0
    %1731 = vmatprep.subr.mxu0 0.0
    %1732 = vmatpush1.msra.mxu0 1.0
    %1733 = vmatprep.subr.mxu0 0.0
    %1734 = vmatpush1.msra.mxu0 1.0
    %1735 = vmatprep.subr.mxu0 0.0
    %1736 = vmatpush1.msra.mxu0 1.0
    %1737 = vmatprep.subr.mxu0 0.0
    %1738 = vmatpush1.msra.mxu0 1.0
    %1739 = vmatprep.subr.mxu0 0.0
    %1740 = vmatpush1.msra.mxu0 1.0
    %1741 = vmatprep.subr.mxu0 0.0
    %1742 = vmatpush1.msra.mxu0 1.0
    %1743 = vmatprep.subr.mxu0 0.0
    %1744 = vmatpush1.msra.mxu0 1.0
    %1745 = vmatprep.subr.mxu0 0.0
    %1746 = vmatpush1.msra.mxu0 1.0
    %1747 = vmatprep.subr.mxu0 0.0
    %1748 = vmatpush1.msra.mxu0 1.0
    %1749 = vmatprep.subr.mxu0 0.0
    %1750 = vmatpush1.msra.mxu0 1.0
    %1751 = vmatprep.subr.mxu0 0.0
    %1752 = vmatpush1.msra.mxu0 1.0
    %1753 = vmatprep.subr.mxu0 0.0
    %1754 = vmatpush1.msra.mxu0 1.0
    %1755 = vmatprep.subr.mxu0 0.0
    %1756 = vmatpush1.msra.mxu0 1.0
    %1757 = vmatprep.subr.mxu0 0.0
    %1758 = vmatpush1.msra.mxu0 1.0
    %1759 = vmatprep.subr.mxu0 0.0
    %1760 = vmatpush1.msra.mxu0 1.0
    %1761 = vmatprep.subr.mxu0 0.0
    %1762 = vmatpush1.msra.mxu0 1.0
    %1763 = vmatprep.subr.mxu0 0.0
    %1764 = vmatpush1.msra.mxu0 1.0
    %1765 = vmatprep.subr.mxu0 0.0
    %1766 = vmatpush1.msra.mxu0 1.0
    %1767 = vmatprep.subr.mxu0 0.0
    %1768 = vmatpush1.msra.mxu0 1.0
    %1769 = vmatprep.subr.mxu0 0.0
    %1770 = vmatpush1.msra.mxu0 1.0
    %1771 = vmatprep.subr.mxu0 0.0
    %1772 = vmatpush1.msra.mxu0 1.0
    %1773 = vmatprep.subr.mxu0 0.0
    %1774 = vmatpush1.msra.mxu0 1.0
    %1775 = vmatprep.subr.mxu0 0.0
    %1776 = vmatpush1.msra.mxu0 1.0
    %1777 = vmatprep.subr.mxu0 0.0
    %1778 = vmatpush1.msra.mxu0 1.0
    %1779 = vmatprep.subr.mxu0 0.0
    %1780 = vmatpush1.msra.mxu0 1.0
    %1781 = vmatprep.subr.mxu0 0.0
    %1782 = vmatpush1.msra.mxu0 1.0
    %1783 = vmatprep.subr.mxu0 0.0
    %1784 = vmatpush1.msra.mxu0 1.0
    %1785 = vmatprep.mubr.f32.mxu0 %v1658
    %1786 = vmatmul.mubr.f32.gmra.mrb[0].mxu0 %v1657
    %v1787 = vpop.f32.mrb[0].mxu0
    %v1788 = vadd.f32 0.0, %v1787
    %v1789 = vpop.f32.mrb[0].mxu0
    %1790 = vmatprep.mubr.f32.mxu0 %v1660
    %1791 = vmatmul.mubr.f32.gmra.mrb[0].mxu0 %v1659
    %v1792 = vpop.f32.mrb[0].mxu0
    %v1793 = vadd.f32 0.0, %v1792
    %v1794 = vpop.f32.mrb[0].mxu0
    %1795 = vmatprep.mubr.f32.mxu0 %v1662
    %1796 = vmatmul.mubr.f32.gmra.mrb[0].mxu0 %v1661
    %v1797 = vpop.f32.mrb[0].mxu0
    %v1798 = vadd.f32 0.0, %v1797
    %v1799 = vpop.f32.mrb[0].mxu0
    %1800 = vmatprep.mubr.f32.mxu0 %v1664
    %1801 = vmatmul.mubr.f32.gmra.mrb[0].mxu0 %v1663
    %v1802 = vpop.f32.mrb[0].mxu0
    %v1803 = vadd.f32 0.0, %v1802
    %v1804 = vpop.f32.mrb[0].mxu0
    %1805 = vmatprep.mubr.f32.mxu0 %v1666
    %1806 = vmatmul.mubr.f32.gmra.mrb[0].mxu0 %v1665
    %v1807 = vpop.f32.mrb[0].mxu0
    %v1808 = vadd.f32 0.0, %v1807
    %v1809 = vpop.f32.mrb[0].mxu0
    %1810 = vmatprep.mubr.f32.mxu0 %v1668
    %1811 = vmatmul.mubr.f32.gmra.mrb[0].mxu0 %v1667
    %v1812 = vpop.f32.mrb[0].mxu0
    %v1813 = vadd.f32 0.0, %v1812
    %v1814 = vpop.f32.mrb[0].mxu0
    %1815 = vmatprep.mubr.f32.mxu0 %v1670
    %1816 = vmatmul.mubr.f32.gmra.mrb[0].mxu0 %v1669
    %v1817 = vpop.f32.mrb[0].mxu0
    %v1818 = vadd.f32 0.0, %v1817
    %v1819 = vpop.f32.mrb[0].mxu0
    %1820 = vmatprep.mubr.f32.mxu0 %v1672
    %1821 = vmatmul.mubr.f32.gmra.mrb[0].mxu0 %v1671
    %v1822 = vpop.f32.mrb[0].mxu0
    %v1823 = vadd.f32 0.0, %v1822
    %v1824 = vpop.f32.mrb[0].mxu0
    %1825 = vmatprep.mubr.f32.mxu0 %v1674
    %1826 = vmatmul.mubr.f32.gmra.mrb[0].mxu0 %v1673
    %v1827 = vpop.f32.mrb[0].mxu0
    %v1828 = vadd.f32 0.0, %v1827
    %v1829 = vpop.f32.mrb[0].mxu0
    %1830 = vmatprep.mubr.f32.mxu0 %v1676
    %1831 = vmatmul.mubr.f32.gmra.mrb[0].mxu0 %v1675
    %v1832 = vpop.f32.mrb[0].mxu0
    %v1833 = vadd.f32 0.0, %v1832
    %v1834 = vpop.f32.mrb[0].mxu0
    %1835 = vmatprep.mubr.f32.mxu0 %v1678
    %1836 = vmatmul.mubr.f32.gmra.mrb[0].mxu0 %v1677
    %v1837 = vpop.f32.mrb[0].mxu0
    %v1838 = vadd.f32 0.0, %v1837
    %v1839 = vpop.f32.mrb[0].mxu0
    %1840 = vmatprep.mubr.f32.mxu0 %v1680
    %1841 = vmatmul.mubr.f32.gmra.mrb[0].mxu0 %v1679
    %v1842 = vpop.f32.mrb[0].mxu0
    %v1843 = vadd.f32 0.0, %v1842
    %v1844 = vpop.f32.mrb[0].mxu0
    %1845 = vmatprep.mubr.f32.mxu0 %v1682
    %1846 = vmatmul.mubr.f32.gmra.mrb[0].mxu0 %v1681
    %v1847 = vpop.f32.mrb[0].mxu0
    %v1848 = vadd.f32 0.0, %v1847
    %v1849 = vpop.f32.mrb[0].mxu0
    %1850 = vmatprep.mubr.f32.mxu0 %v1684
    %1851 = vmatmul.mubr.f32.gmra.mrb[0].mxu0 %v1683
    %v1852 = vpop.f32.mrb[0].mxu0
    %v1853 = vadd.f32 0.0, %v1852
    %v1854 = vpop.f32.mrb[0].mxu0
    %1855 = vmatprep.mubr.f32.mxu0 %v1686
    %1856 = vmatmul.mubr.f32.gmra.mrb[0].mxu0 %v1685
    %v1857 = vpop.f32.mrb[0].mxu0
    %v1858 = vadd.f32 0.0, %v1857
    %v1859 = vpop.f32.mrb[0].mxu0
    %1860 = vmatprep.mubr.f32.mxu0 %v1688
    %1861 = vmatmul.mubr.f32.gmra.mrb[0].mxu0 %v1687
    %v1862 = vpop.f32.mrb[0].mxu0
    %v1863 = vadd.f32 0.0, %v1862
    %v1864 = vpop.f32.mrb[0].mxu0
    %1865 = vmatprep.mubr.f32.mxu0 %v1690
    %1866 = vmatmul.mubr.f32.gmra.mrb[0].mxu0 %v1689
    %v1867 = vpop.f32.mrb[0].mxu0
    %v1868 = vadd.f32 0.0, %v1867
    %v1869 = vpop.f32.mrb[0].mxu0
    %1870 = vmatprep.mubr.f32.mxu0 %v1692
    %1871 = vmatmul.mubr.f32.gmra.mrb[0].mxu0 %v1691
    %v1872 = vpop.f32.mrb[0].mxu0
    %v1873 = vadd.f32 0.0, %v1872
    %v1874 = vpop.f32.mrb[0].mxu0
    %1875 = vmatprep.mubr.f32.mxu0 %v1694
    %1876 = vmatmul.mubr.f32.gmra.mrb[0].mxu0 %v1693
    %v1877 = vpop.f32.mrb[0].mxu0
    %v1878 = vadd.f32 0.0, %v1877
    %v1879 = vpop.f32.mrb[0].mxu0
    %1880 = vmatprep.mubr.f32.mxu0 %v1696
    %1881 = vmatmul.mubr.f32.gmra.mrb[0].mxu0 %v1695
    %v1882 = vpop.f32.mrb[0].mxu0
    %v1883 = vadd.f32 0.0, %v1882
    %v1884 = vpop.f32.mrb[0].mxu0
    %1885 = vmatprep.mubr.f32.mxu0 %v1698
    %1886 = vmatmul.mubr.f32.gmra.mrb[0].mxu0 %v1697
    %v1887 = vpop.f32.mrb[0].mxu0
    %v1888 = vadd.f32 0.0, %v1887
    %v1889 = vpop.f32.mrb[0].mxu0
    %1890 = vmatprep.mubr.f32.mxu0 %v1700
    %1891 = vmatmul.mubr.f32.gmra.mrb[0].mxu0 %v1699
    %v1892 = vpop.f32.mrb[0].mxu0
    %v1893 = vadd.f32 0.0, %v1892
    %v1894 = vpop.f32.mrb[0].mxu0
    %1895 = vmatprep.mubr.f32.mxu0 %v1702
    %1896 = vmatmul.mubr.f32.gmra.mrb[0].mxu0 %v1701
    %v1897 = vpop.f32.mrb[0].mxu0
    %v1898 = vadd.f32 0.0, %v1897
    %v1899 = vpop.f32.mrb[0].mxu0
    %1900 = vmatprep.mubr.f32.mxu0 %v1704
    %1901 = vmatmul.mubr.f32.gmra.mrb[0].mxu0 %v1703
    %v1902 = vpop.f32.mrb[0].mxu0
    %v1903 = vadd.f32 0.0, %v1902
    %v1904 = vpop.f32.mrb[0].mxu0
    %1905 = vmatprep.mubr.f32.mxu0 %v1706
    %1906 = vmatmul.mubr.f32.gmra.mrb[0].mxu0 %v1705
    %v1907 = vpop.f32.mrb[0].mxu0
    %v1908 = vadd.f32 0.0, %v1907
    %v1909 = vpop.f32.mrb[0].mxu0
    %1910 = vmatprep.mubr.f32.mxu0 %v1708
    %1911 = vmatmul.mubr.f32.gmra.mrb[0].mxu0 %v1707
    %v1912 = vpop.f32.mrb[0].mxu0
    %v1913 = vadd.f32 0.0, %v1912
    %v1914 = vpop.f32.mrb[0].mxu0
    %1915 = vmatprep.mubr.f32.mxu0 %v1710
    %1916 = vmatmul.mubr.f32.gmra.mrb[0].mxu0 %v1709
    %v1917 = vpop.f32.mrb[0].mxu0
    %v1918 = vadd.f32 0.0, %v1917
    %v1919 = vpop.f32.mrb[0].mxu0
    %1920 = vmatprep.mubr.f32.mxu0 %v1712
    %1921 = vmatmul.mubr.f32.gmra.mrb[0].mxu0 %v1711
    %v1922 = vpop.f32.mrb[0].mxu0
    %v1923 = vadd.f32 0.0, %v1922
    %v1924 = vpop.f32.mrb[0].mxu0
    %1925 = vmatprep.mubr.f32.mxu0 %v1714
    %1926 = vmatmul.mubr.f32.gmra.mrb[0].mxu0 %v1713
    %v1927 = vpop.f32.mrb[0].mxu0
    %v1928 = vadd.f32 0.0, %v1927
    %v1929 = vpop.f32.mrb[0].mxu0
    %1930 = vmatprep.mubr.f32.mxu0 %v1716
    %1931 = vmatmul.mubr.f32.gmra.mrb[0].mxu0 %v1715
    %v1932 = vpop.f32.mrb[0].mxu0
    %v1933 = vadd.f32 0.0, %v1932
    %v1934 = vpop.f32.mrb[0].mxu0
    %1935 = vmatprep.mubr.f32.mxu0 %v1718
    %1936 = vmatmul.mubr.f32.gmra.mrb[0].mxu0 %v1717
    %v1937 = vpop.f32.mrb[0].mxu0
    %v1938 = vadd.f32 0.0, %v1937
    %v1939 = vpop.f32.mrb[0].mxu0
    %1940 = vmatprep.mubr.f32.mxu0 %v1720
    %1941 = vmatmul.mubr.f32.gmra.mrb[0].mxu0 %v1719
    %v1942 = vpop.f32.mrb[0].mxu0
    %v1943 = vadd.f32 0.0, %v1942
    %v1944 = vpop.f32.mrb[0].mxu0
    %1945 = vdwg.mxu0
    %v1946 = vmul.f32 %v1788, 0.00390625
    %v1947 = vmul.f32 %v1793, 0.00390625
    %v1948 = vmul.f32 %v1798, 0.00390625
    %v1949 = vmul.f32 %v1803, 0.00390625
    %v1950 = vmul.f32 %v1808, 0.00390625
    %v1951 = vmul.f32 %v1813, 0.00390625
    %v1952 = vmul.f32 %v1818, 0.00390625
    %v1953 = vmul.f32 %v1823, 0.00390625
    %v1954 = vmul.f32 %v1828, 0.00390625
    %v1955 = vmul.f32 %v1833, 0.00390625
    %v1956 = vmul.f32 %v1838, 0.00390625
    %v1957 = vmul.f32 %v1843, 0.00390625
    %v1958 = vmul.f32 %v1848, 0.00390625
    %v1959 = vmul.f32 %v1853, 0.00390625
    %v1960 = vmul.f32 %v1858, 0.00390625
    %v1961 = vmul.f32 %v1863, 0.00390625
    %v1962 = vmul.f32 %v1868, 0.00390625
    %v1963 = vmul.f32 %v1873, 0.00390625
    %v1964 = vmul.f32 %v1878, 0.00390625
    %v1965 = vmul.f32 %v1883, 0.00390625
    %v1966 = vmul.f32 %v1888, 0.00390625
    %v1967 = vmul.f32 %v1893, 0.00390625
    %v1968 = vmul.f32 %v1898, 0.00390625
    %v1969 = vmul.f32 %v1903, 0.00390625
    %v1970 = vmul.f32 %v1908, 0.00390625
    %v1971 = vmul.f32 %v1913, 0.00390625
    %v1972 = vmul.f32 %v1918, 0.00390625
    %v1973 = vmul.f32 %v1923, 0.00390625
    %v1974 = vmul.f32 %v1928, 0.00390625
    %v1975 = vmul.f32 %v1933, 0.00390625
    %v1976 = vmul.f32 %v1938, 0.00390625
    %v1977 = vmul.f32 %v1943, 0.00390625
    %v1978 = vadd.f32 %v1946, 1e-05
    %v1979 = vadd.f32 %v1947, 1e-05
    %v1980 = vadd.f32 %v1948, 1e-05
    %v1981 = vadd.f32 %v1949, 1e-05
    %v1982 = vadd.f32 %v1950, 1e-05
    %v1983 = vadd.f32 %v1951, 1e-05
    %v1984 = vadd.f32 %v1952, 1e-05
    %v1985 = vadd.f32 %v1953, 1e-05
    %v1986 = vadd.f32 %v1954, 1e-05
    %v1987 = vadd.f32 %v1955, 1e-05
    %v1988 = vadd.f32 %v1956, 1e-05
    %v1989 = vadd.f32 %v1957, 1e-05
    %v1990 = vadd.f32 %v1958, 1e-05
    %v1991 = vadd.f32 %v1959, 1e-05
    %v1992 = vadd.f32 %v1960, 1e-05
    %v1993 = vadd.f32 %v1961, 1e-05
    %v1994 = vadd.f32 %v1962, 1e-05
    %v1995 = vadd.f32 %v1963, 1e-05
    %v1996 = vadd.f32 %v1964, 1e-05
    %v1997 = vadd.f32 %v1965, 1e-05
    %v1998 = vadd.f32 %v1966, 1e-05
    %v1999 = vadd.f32 %v1967, 1e-05
    %v2000 = vadd.f32 %v1968, 1e-05
    %v2001 = vadd.f32 %v1969, 1e-05
    %v2002 = vadd.f32 %v1970, 1e-05
    %v2003 = vadd.f32 %v1971, 1e-05
    %v2004 = vadd.f32 %v1972, 1e-05
    %v2005 = vadd.f32 %v1973, 1e-05
    %v2006 = vadd.f32 %v1974, 1e-05
    %v2007 = vadd.f32 %v1975, 1e-05
    %v2008 = vadd.f32 %v1976, 1e-05
    %v2009 = vadd.f32 %v1977, 1e-05
    %v2010 = vrsqrt.pop %v1978
    %v2011 = vrsqrt.pop %v1979
    %v2012 = vrsqrt.pop %v1980
    %v2013 = vrsqrt.pop %v1981
    %v2014 = vrsqrt.pop %v1982
    %v2015 = vrsqrt.pop %v1983
    %v2016 = vrsqrt.pop %v1984
    %v2017 = vrsqrt.pop %v1985
    %v2018 = vrsqrt.pop %v1986
    %v2019 = vrsqrt.pop %v1987
    %v2020 = vrsqrt.pop %v1988
    %v2021 = vrsqrt.pop %v1989
    %v2022 = vrsqrt.pop %v1990
    %v2023 = vrsqrt.pop %v1991
    %v2024 = vrsqrt.pop %v1992
    %v2025 = vrsqrt.pop %v1993
    %v2026 = vrsqrt.pop %v1994
    %v2027 = vrsqrt.pop %v1995
    %v2028 = vrsqrt.pop %v1996
    %v2029 = vrsqrt.pop %v1997
    %v2030 = vrsqrt.pop %v1998
    %v2031 = vrsqrt.pop %v1999
    %v2032 = vrsqrt.pop %v2000
    %v2033 = vrsqrt.pop %v2001
    %v2034 = vrsqrt.pop %v2002
    %v2035 = vrsqrt.pop %v2003
    %v2036 = vrsqrt.pop %v2004
    %v2037 = vrsqrt.pop %v2005
    %v2038 = vrsqrt.pop %v2006
    %v2039 = vrsqrt.pop %v2007
    %v2040 = vrsqrt.pop %v2008
    %v2041 = vrsqrt.pop %v2009
    %2043 = vset.pattern.permute.xlu0 0
    %2044 = vperm.xlu0 %2043, %v2010
    %v2045 = vpop.permute.xlu0 %2044
    %2048 = vset.pattern.permute.xlu0 0
    %2049 = vperm.xlu0 %2048, %v2011
    %v2050 = vpop.permute.xlu0 %2049
    %2053 = vset.pattern.permute.xlu0 0
    %2054 = vperm.xlu0 %2053, %v2012
    %v2055 = vpop.permute.xlu0 %2054
    %2058 = vset.pattern.permute.xlu0 0
    %2059 = vperm.xlu0 %2058, %v2013
    %v2060 = vpop.permute.xlu0 %2059
    %2063 = vset.pattern.permute.xlu0 0
    %2064 = vperm.xlu0 %2063, %v2014
    %v2065 = vpop.permute.xlu0 %2064
    %2068 = vset.pattern.permute.xlu0 0
    %2069 = vperm.xlu0 %2068, %v2015
    %v2070 = vpop.permute.xlu0 %2069
    %2073 = vset.pattern.permute.xlu0 0
    %2074 = vperm.xlu0 %2073, %v2016
    %v2075 = vpop.permute.xlu0 %2074
    %2078 = vset.pattern.permute.xlu0 0
    %2079 = vperm.xlu0 %2078, %v2017
    %v2080 = vpop.permute.xlu0 %2079
    %2083 = vset.pattern.permute.xlu0 0
    %2084 = vperm.xlu0 %2083, %v2018
    %v2085 = vpop.permute.xlu0 %2084
    %2088 = vset.pattern.permute.xlu0 0
    %2089 = vperm.xlu0 %2088, %v2019
    %v2090 = vpop.permute.xlu0 %2089
    %2093 = vset.pattern.permute.xlu0 0
    %2094 = vperm.xlu0 %2093, %v2020
    %v2095 = vpop.permute.xlu0 %2094
    %2098 = vset.pattern.permute.xlu0 0
    %2099 = vperm.xlu0 %2098, %v2021
    %v2100 = vpop.permute.xlu0 %2099
    %2103 = vset.pattern.permute.xlu0 0
    %2104 = vperm.xlu0 %2103, %v2022
    %v2105 = vpop.permute.xlu0 %2104
    %2108 = vset.pattern.permute.xlu0 0
    %2109 = vperm.xlu0 %2108, %v2023
    %v2110 = vpop.permute.xlu0 %2109
    %2113 = vset.pattern.permute.xlu0 0
    %2114 = vperm.xlu0 %2113, %v2024
    %v2115 = vpop.permute.xlu0 %2114
    %2118 = vset.pattern.permute.xlu0 0
    %2119 = vperm.xlu0 %2118, %v2025
    %v2120 = vpop.permute.xlu0 %2119
    %2123 = vset.pattern.permute.xlu0 0
    %2124 = vperm.xlu0 %2123, %v2026
    %v2125 = vpop.permute.xlu0 %2124
    %2128 = vset.pattern.permute.xlu0 0
    %2129 = vperm.xlu0 %2128, %v2027
    %v2130 = vpop.permute.xlu0 %2129
    %2133 = vset.pattern.permute.xlu0 0
    %2134 = vperm.xlu0 %2133, %v2028
    %v2135 = vpop.permute.xlu0 %2134
    %2138 = vset.pattern.permute.xlu0 0
    %2139 = vperm.xlu0 %2138, %v2029
    %v2140 = vpop.permute.xlu0 %2139
    %2143 = vset.pattern.permute.xlu0 0
    %2144 = vperm.xlu0 %2143, %v2030
    %v2145 = vpop.permute.xlu0 %2144
    %2148 = vset.pattern.permute.xlu0 0
    %2149 = vperm.xlu0 %2148, %v2031
    %v2150 = vpop.permute.xlu0 %2149
    %2153 = vset.pattern.permute.xlu0 0
    %2154 = vperm.xlu0 %2153, %v2032
    %v2155 = vpop.permute.xlu0 %2154
    %2158 = vset.pattern.permute.xlu0 0
    %2159 = vperm.xlu0 %2158, %v2033
    %v2160 = vpop.permute.xlu0 %2159
    %2163 = vset.pattern.permute.xlu0 0
    %2164 = vperm.xlu0 %2163, %v2034
    %v2165 = vpop.permute.xlu0 %2164
    %2168 = vset.pattern.permute.xlu0 0
    %2169 = vperm.xlu0 %2168, %v2035
    %v2170 = vpop.permute.xlu0 %2169
    %2173 = vset.pattern.permute.xlu0 0
    %2174 = vperm.xlu0 %2173, %v2036
    %v2175 = vpop.permute.xlu0 %2174
    %2178 = vset.pattern.permute.xlu0 0
    %2179 = vperm.xlu0 %2178, %v2037
    %v2180 = vpop.permute.xlu0 %2179
    %2183 = vset.pattern.permute.xlu0 0
    %2184 = vperm.xlu0 %2183, %v2038
    %v2185 = vpop.permute.xlu0 %2184
    %2188 = vset.pattern.permute.xlu0 0
    %2189 = vperm.xlu0 %2188, %v2039
    %v2190 = vpop.permute.xlu0 %2189
    %2193 = vset.pattern.permute.xlu0 0
    %2194 = vperm.xlu0 %2193, %v2040
    %v2195 = vpop.permute.xlu0 %2194
    %2198 = vset.pattern.permute.xlu0 0
    %2199 = vperm.xlu0 %2198, %v2041
    %v2200 = vpop.permute.xlu0 %2199
    %v2202 = vmul.f32 %v1593, %v2045
    %v2203 = vmul.f32 %v1594, %v2045
    %v2204 = vmul.f32 %v1595, %v2050
    %v2205 = vmul.f32 %v1596, %v2050
    %v2206 = vmul.f32 %v1597, %v2055
    %v2207 = vmul.f32 %v1598, %v2055
    %v2208 = vmul.f32 %v1599, %v2060
    %v2209 = vmul.f32 %v1600, %v2060
    %v2210 = vmul.f32 %v1601, %v2065
    %v2211 = vmul.f32 %v1602, %v2065
    %v2212 = vmul.f32 %v1603, %v2070
    %v2213 = vmul.f32 %v1604, %v2070
    %v2214 = vmul.f32 %v1605, %v2075
    %v2215 = vmul.f32 %v1606, %v2075
    %v2216 = vmul.f32 %v1607, %v2080
    %v2217 = vmul.f32 %v1608, %v2080
    %v2218 = vmul.f32 %v1609, %v2085
    %v2219 = vmul.f32 %v1610, %v2085
    %v2220 = vmul.f32 %v1611, %v2090
    %v2221 = vmul.f32 %v1612, %v2090
    %v2222 = vmul.f32 %v1613, %v2095
    %v2223 = vmul.f32 %v1614, %v2095
    %v2224 = vmul.f32 %v1615, %v2100
    %v2225 = vmul.f32 %v1616, %v2100
    %v2226 = vmul.f32 %v1617, %v2105
    %v2227 = vmul.f32 %v1618, %v2105
    %v2228 = vmul.f32 %v1619, %v2110
    %v2229 = vmul.f32 %v1620, %v2110
    %v2230 = vmul.f32 %v1621, %v2115
    %v2231 = vmul.f32 %v1622, %v2115
    %v2232 = vmul.f32 %v1623, %v2120
    %v2233 = vmul.f32 %v1624, %v2120
    %v2234 = vmul.f32 %v1625, %v2125
    %v2235 = vmul.f32 %v1626, %v2125
    %v2236 = vmul.f32 %v1627, %v2130
    %v2237 = vmul.f32 %v1628, %v2130
    %v2238 = vmul.f32 %v1629, %v2135
    %v2239 = vmul.f32 %v1630, %v2135
    %v2240 = vmul.f32 %v1631, %v2140
    %v2241 = vmul.f32 %v1632, %v2140
    %v2242 = vmul.f32 %v1633, %v2145
    %v2243 = vmul.f32 %v1634, %v2145
    %v2244 = vmul.f32 %v1635, %v2150
    %v2245 = vmul.f32 %v1636, %v2150
    %v2246 = vmul.f32 %v1637, %v2155
    %v2247 = vmul.f32 %v1638, %v2155
    %v2248 = vmul.f32 %v1639, %v2160
    %v2249 = vmul.f32 %v1640, %v2160
    %v2250 = vmul.f32 %v1641, %v2165
    %v2251 = vmul.f32 %v1642, %v2165
    %v2252 = vmul.f32 %v1643, %v2170
    %v2253 = vmul.f32 %v1644, %v2170
    %v2254 = vmul.f32 %v1645, %v2175
    %v2255 = vmul.f32 %v1646, %v2175
    %v2256 = vmul.f32 %v1647, %v2180
    %v2257 = vmul.f32 %v1648, %v2180
    %v2258 = vmul.f32 %v1649, %v2185
    %v2259 = vmul.f32 %v1650, %v2185
    %v2260 = vmul.f32 %v1651, %v2190
    %v2261 = vmul.f32 %v1652, %v2190
    %v2262 = vmul.f32 %v1653, %v2195
    %v2263 = vmul.f32 %v1654, %v2195
    %v2264 = vmul.f32 %v1655, %v2200
    %v2265 = vmul.f32 %v1656, %v2200
    %v2266 = vand.u32 2147483647, %v2202
    %v2267 = vand.u32 2147483647, %v2203
    %v2268 = vand.u32 2147483647, %v2204
    %v2269 = vand.u32 2147483647, %v2205
    %v2270 = vand.u32 2147483647, %v2206
    %v2271 = vand.u32 2147483647, %v2207
    %v2272 = vand.u32 2147483647, %v2208
    %v2273 = vand.u32 2147483647, %v2209
    %v2274 = vand.u32 2147483647, %v2210
    %v2275 = vand.u32 2147483647, %v2211
    %v2276 = vand.u32 2147483647, %v2212
    %v2277 = vand.u32 2147483647, %v2213
    %v2278 = vand.u32 2147483647, %v2214
    %v2279 = vand.u32 2147483647, %v2215
    %v2280 = vand.u32 2147483647, %v2216
    %v2281 = vand.u32 2147483647, %v2217
    %v2282 = vand.u32 2147483647, %v2218
    %v2283 = vand.u32 2147483647, %v2219
    %v2284 = vand.u32 2147483647, %v2220
    %v2285 = vand.u32 2147483647, %v2221
    %v2286 = vand.u32 2147483647, %v2222
    %v2287 = vand.u32 2147483647, %v2223
    %v2288 = vand.u32 2147483647, %v2224
    %v2289 = vand.u32 2147483647, %v2225
    %v2290 = vand.u32 2147483647, %v2226
    %v2291 = vand.u32 2147483647, %v2227
    %v2292 = vand.u32 2147483647, %v2228
    %v2293 = vand.u32 2147483647, %v2229
    %v2294 = vand.u32 2147483647, %v2230
    %v2295 = vand.u32 2147483647, %v2231
    %v2296 = vand.u32 2147483647, %v2232
    %v2297 = vand.u32 2147483647, %v2233
    %v2298 = vand.u32 2147483647, %v2234
    %v2299 = vand.u32 2147483647, %v2235
    %v2300 = vand.u32 2147483647, %v2236
    %v2301 = vand.u32 2147483647, %v2237
    %v2302 = vand.u32 2147483647, %v2238
    %v2303 = vand.u32 2147483647, %v2239
    %v2304 = vand.u32 2147483647, %v2240
    %v2305 = vand.u32 2147483647, %v2241
    %v2306 = vand.u32 2147483647, %v2242
    %v2307 = vand.u32 2147483647, %v2243
    %v2308 = vand.u32 2147483647, %v2244
    %v2309 = vand.u32 2147483647, %v2245
    %v2310 = vand.u32 2147483647, %v2246
    %v2311 = vand.u32 2147483647, %v2247
    %v2312 = vand.u32 2147483647, %v2248
    %v2313 = vand.u32 2147483647, %v2249
    %v2314 = vand.u32 2147483647, %v2250
    %v2315 = vand.u32 2147483647, %v2251
    %v2316 = vand.u32 2147483647, %v2252
    %v2317 = vand.u32 2147483647, %v2253
    %v2318 = vand.u32 2147483647, %v2254
    %v2319 = vand.u32 2147483647, %v2255
    %v2320 = vand.u32 2147483647, %v2256
    %v2321 = vand.u32 2147483647, %v2257
    %v2322 = vand.u32 2147483647, %v2258
    %v2323 = vand.u32 2147483647, %v2259
    %v2324 = vand.u32 2147483647, %v2260
    %v2325 = vand.u32 2147483647, %v2261
    %v2326 = vand.u32 2147483647, %v2262
    %v2327 = vand.u32 2147483647, %v2263
    %v2328 = vand.u32 2147483647, %v2264
    %v2329 = vand.u32 2147483647, %v2265
    %v2330 = vmax.f32 %v2266, %v2267
    %2331 = vmax.xlane.f32.xlu0 %v2330
    %v2332 = vpop.xlane.xlu0 %2331
    %v2333 = vmax.f32 %v2268, %v2269
    %2334 = vmax.xlane.f32.xlu0 %v2333
    %v2335 = vpop.xlane.xlu0 %2334
    %v2336 = vmax.f32 %v2270, %v2271
    %2337 = vmax.xlane.f32.xlu0 %v2336
    %v2338 = vpop.xlane.xlu0 %2337
    %v2339 = vmax.f32 %v2272, %v2273
    %2340 = vmax.xlane.f32.xlu0 %v2339
    %v2341 = vpop.xlane.xlu0 %2340
    %v2342 = vmax.f32 %v2274, %v2275
    %2343 = vmax.xlane.f32.xlu0 %v2342
    %v2344 = vpop.xlane.xlu0 %2343
    %v2345 = vmax.f32 %v2276, %v2277
    %2346 = vmax.xlane.f32.xlu0 %v2345
    %v2347 = vpop.xlane.xlu0 %2346
    %v2348 = vmax.f32 %v2278, %v2279
    %2349 = vmax.xlane.f32.xlu0 %v2348
    %v2350 = vpop.xlane.xlu0 %2349
    %v2351 = vmax.f32 %v2280, %v2281
    %2352 = vmax.xlane.f32.xlu0 %v2351
    %v2353 = vpop.xlane.xlu0 %2352
    %v2354 = vmax.f32 %v2282, %v2283
    %2355 = vmax.xlane.f32.xlu0 %v2354
    %v2356 = vpop.xlane.xlu0 %2355
    %v2357 = vmax.f32 %v2284, %v2285
    %2358 = vmax.xlane.f32.xlu0 %v2357
    %v2359 = vpop.xlane.xlu0 %2358
    %v2360 = vmax.f32 %v2286, %v2287
    %2361 = vmax.xlane.f32.xlu0 %v2360
    %v2362 = vpop.xlane.xlu0 %2361
    %v2363 = vmax.f32 %v2288, %v2289
    %2364 = vmax.xlane.f32.xlu0 %v2363
    %v2365 = vpop.xlane.xlu0 %2364
    %v2366 = vmax.f32 %v2290, %v2291
    %2367 = vmax.xlane.f32.xlu0 %v2366
    %v2368 = vpop.xlane.xlu0 %2367
    %v2369 = vmax.f32 %v2292, %v2293
    %2370 = vmax.xlane.f32.xlu0 %v2369
    %v2371 = vpop.xlane.xlu0 %2370
    %v2372 = vmax.f32 %v2294, %v2295
    %2373 = vmax.xlane.f32.xlu0 %v2372
    %v2374 = vpop.xlane.xlu0 %2373
    %v2375 = vmax.f32 %v2296, %v2297
    %2376 = vmax.xlane.f32.xlu0 %v2375
    %v2377 = vpop.xlane.xlu0 %2376
    %v2378 = vmax.f32 %v2298, %v2299
    %2379 = vmax.xlane.f32.xlu0 %v2378
    %v2380 = vpop.xlane.xlu0 %2379
    %v2381 = vmax.f32 %v2300, %v2301
    %2382 = vmax.xlane.f32.xlu0 %v2381
    %v2383 = vpop.xlane.xlu0 %2382
    %v2384 = vmax.f32 %v2302, %v2303
    %2385 = vmax.xlane.f32.xlu0 %v2384
    %v2386 = vpop.xlane.xlu0 %2385
    %v2387 = vmax.f32 %v2304, %v2305
    %2388 = vmax.xlane.f32.xlu0 %v2387
    %v2389 = vpop.xlane.xlu0 %2388
    %v2390 = vmax.f32 %v2306, %v2307
    %2391 = vmax.xlane.f32.xlu0 %v2390
    %v2392 = vpop.xlane.xlu0 %2391
    %v2393 = vmax.f32 %v2308, %v2309
    %2394 = vmax.xlane.f32.xlu0 %v2393
    %v2395 = vpop.xlane.xlu0 %2394
    %v2396 = vmax.f32 %v2310, %v2311
    %2397 = vmax.xlane.f32.xlu0 %v2396
    %v2398 = vpop.xlane.xlu0 %2397
    %v2399 = vmax.f32 %v2312, %v2313
    %2400 = vmax.xlane.f32.xlu0 %v2399
    %v2401 = vpop.xlane.xlu0 %2400
    %v2402 = vmax.f32 %v2314, %v2315
    %2403 = vmax.xlane.f32.xlu0 %v2402
    %v2404 = vpop.xlane.xlu0 %2403
    %v2405 = vmax.f32 %v2316, %v2317
    %2406 = vmax.xlane.f32.xlu0 %v2405
    %v2407 = vpop.xlane.xlu0 %2406
    %v2408 = vmax.f32 %v2318, %v2319
    %2409 = vmax.xlane.f32.xlu0 %v2408
    %v2410 = vpop.xlane.xlu0 %2409
    %v2411 = vmax.f32 %v2320, %v2321
    %2412 = vmax.xlane.f32.xlu0 %v2411
    %v2413 = vpop.xlane.xlu0 %2412
    %v2414 = vmax.f32 %v2322, %v2323
    %2415 = vmax.xlane.f32.xlu0 %v2414
    %v2416 = vpop.xlane.xlu0 %2415
    %v2417 = vmax.f32 %v2324, %v2325
    %2418 = vmax.xlane.f32.xlu0 %v2417
    %v2419 = vpop.xlane.xlu0 %2418
    %v2420 = vmax.f32 %v2326, %v2327
    %2421 = vmax.xlane.f32.xlu0 %v2420
    %v2422 = vpop.xlane.xlu0 %2421
    %v2423 = vmax.f32 %v2328, %v2329
    %2424 = vmax.xlane.f32.xlu0 %v2423
    %v2425 = vpop.xlane.xlu0 %2424
    %v2426 = vmax.f32 %v2332, 1e-08
    %v2427 = vmax.f32 %v2335, 1e-08
    %v2428 = vmax.f32 %v2338, 1e-08
    %v2429 = vmax.f32 %v2341, 1e-08
    %v2430 = vmax.f32 %v2344, 1e-08
    %v2431 = vmax.f32 %v2347, 1e-08
    %v2432 = vmax.f32 %v2350, 1e-08
    %v2433 = vmax.f32 %v2353, 1e-08
    %v2434 = vmax.f32 %v2356, 1e-08
    %v2435 = vmax.f32 %v2359, 1e-08
    %v2436 = vmax.f32 %v2362, 1e-08
    %v2437 = vmax.f32 %v2365, 1e-08
    %v2438 = vmax.f32 %v2368, 1e-08
    %v2439 = vmax.f32 %v2371, 1e-08
    %v2440 = vmax.f32 %v2374, 1e-08
    %v2441 = vmax.f32 %v2377, 1e-08
    %v2442 = vmax.f32 %v2380, 1e-08
    %v2443 = vmax.f32 %v2383, 1e-08
    %v2444 = vmax.f32 %v2386, 1e-08
    %v2445 = vmax.f32 %v2389, 1e-08
    %v2446 = vmax.f32 %v2392, 1e-08
    %v2447 = vmax.f32 %v2395, 1e-08
    %v2448 = vmax.f32 %v2398, 1e-08
    %v2449 = vmax.f32 %v2401, 1e-08
    %v2450 = vmax.f32 %v2404, 1e-08
    %v2451 = vmax.f32 %v2407, 1e-08
    %v2452 = vmax.f32 %v2410, 1e-08
    %v2453 = vmax.f32 %v2413, 1e-08
    %v2454 = vmax.f32 %v2416, 1e-08
    %v2455 = vmax.f32 %v2419, 1e-08
    %v2456 = vmax.f32 %v2422, 1e-08
    %v2457 = vmax.f32 %v2425, 1e-08
    %v2458 = vrcp.pop %v2426
    %v2459 = vmul.f32 127.0, %v2458
    %v2460 = vrcp.pop %v2427
    %v2461 = vmul.f32 127.0, %v2460
    %v2462 = vrcp.pop %v2428
    %v2463 = vmul.f32 127.0, %v2462
    %v2464 = vrcp.pop %v2429
    %v2465 = vmul.f32 127.0, %v2464
    %v2466 = vrcp.pop %v2430
    %v2467 = vmul.f32 127.0, %v2466
    %v2468 = vrcp.pop %v2431
    %v2469 = vmul.f32 127.0, %v2468
    %v2470 = vrcp.pop %v2432
    %v2471 = vmul.f32 127.0, %v2470
    %v2472 = vrcp.pop %v2433
    %v2473 = vmul.f32 127.0, %v2472
    %v2474 = vrcp.pop %v2434
    %v2475 = vmul.f32 127.0, %v2474
    %v2476 = vrcp.pop %v2435
    %v2477 = vmul.f32 127.0, %v2476
    %v2478 = vrcp.pop %v2436
    %v2479 = vmul.f32 127.0, %v2478
    %v2480 = vrcp.pop %v2437
    %v2481 = vmul.f32 127.0, %v2480
    %v2482 = vrcp.pop %v2438
    %v2483 = vmul.f32 127.0, %v2482
    %v2484 = vrcp.pop %v2439
    %v2485 = vmul.f32 127.0, %v2484
    %v2486 = vrcp.pop %v2440
    %v2487 = vmul.f32 127.0, %v2486
    %v2488 = vrcp.pop %v2441
    %v2489 = vmul.f32 127.0, %v2488
    %v2490 = vrcp.pop %v2442
    %v2491 = vmul.f32 127.0, %v2490
    %v2492 = vrcp.pop %v2443
    %v2493 = vmul.f32 127.0, %v2492
    %v2494 = vrcp.pop %v2444
    %v2495 = vmul.f32 127.0, %v2494
    %v2496 = vrcp.pop %v2445
    %v2497 = vmul.f32 127.0, %v2496
    %v2498 = vrcp.pop %v2446
    %v2499 = vmul.f32 127.0, %v2498
    %v2500 = vrcp.pop %v2447
    %v2501 = vmul.f32 127.0, %v2500
    %v2502 = vrcp.pop %v2448
    %v2503 = vmul.f32 127.0, %v2502
    %v2504 = vrcp.pop %v2449
    %v2505 = vmul.f32 127.0, %v2504
    %v2506 = vrcp.pop %v2450
    %v2507 = vmul.f32 127.0, %v2506
    %v2508 = vrcp.pop %v2451
    %v2509 = vmul.f32 127.0, %v2508
    %v2510 = vrcp.pop %v2452
    %v2511 = vmul.f32 127.0, %v2510
    %v2512 = vrcp.pop %v2453
    %v2513 = vmul.f32 127.0, %v2512
    %v2514 = vrcp.pop %v2454
    %v2515 = vmul.f32 127.0, %v2514
    %v2516 = vrcp.pop %v2455
    %v2517 = vmul.f32 127.0, %v2516
    %v2518 = vrcp.pop %v2456
    %v2519 = vmul.f32 127.0, %v2518
    %v2520 = vrcp.pop %v2457
    %v2521 = vmul.f32 127.0, %v2520
    %v2522 = vmul.f32 %v2202, %v2459
    %v2523 = vmul.f32 %v2203, %v2459
    %v2524 = vmul.f32 %v2204, %v2461
    %v2525 = vmul.f32 %v2205, %v2461
    %v2526 = vmul.f32 %v2206, %v2463
    %v2527 = vmul.f32 %v2207, %v2463
    %v2528 = vmul.f32 %v2208, %v2465
    %v2529 = vmul.f32 %v2209, %v2465
    %v2530 = vmul.f32 %v2210, %v2467
    %v2531 = vmul.f32 %v2211, %v2467
    %v2532 = vmul.f32 %v2212, %v2469
    %v2533 = vmul.f32 %v2213, %v2469
    %v2534 = vmul.f32 %v2214, %v2471
    %v2535 = vmul.f32 %v2215, %v2471
    %v2536 = vmul.f32 %v2216, %v2473
    %v2537 = vmul.f32 %v2217, %v2473
    %v2538 = vmul.f32 %v2218, %v2475
    %v2539 = vmul.f32 %v2219, %v2475
    %v2540 = vmul.f32 %v2220, %v2477
    %v2541 = vmul.f32 %v2221, %v2477
    %v2542 = vmul.f32 %v2222, %v2479
    %v2543 = vmul.f32 %v2223, %v2479
    %v2544 = vmul.f32 %v2224, %v2481
    %v2545 = vmul.f32 %v2225, %v2481
    %v2546 = vmul.f32 %v2226, %v2483
    %v2547 = vmul.f32 %v2227, %v2483
    %v2548 = vmul.f32 %v2228, %v2485
    %v2549 = vmul.f32 %v2229, %v2485
    %v2550 = vmul.f32 %v2230, %v2487
    %v2551 = vmul.f32 %v2231, %v2487
    %v2552 = vmul.f32 %v2232, %v2489
    %v2553 = vmul.f32 %v2233, %v2489
    %v2554 = vmul.f32 %v2234, %v2491
    %v2555 = vmul.f32 %v2235, %v2491
    %v2556 = vmul.f32 %v2236, %v2493
    %v2557 = vmul.f32 %v2237, %v2493
    %v2558 = vmul.f32 %v2238, %v2495
    %v2559 = vmul.f32 %v2239, %v2495
    %v2560 = vmul.f32 %v2240, %v2497
    %v2561 = vmul.f32 %v2241, %v2497
    %v2562 = vmul.f32 %v2242, %v2499
    %v2563 = vmul.f32 %v2243, %v2499
    %v2564 = vmul.f32 %v2244, %v2501
    %v2565 = vmul.f32 %v2245, %v2501
    %v2566 = vmul.f32 %v2246, %v2503
    %v2567 = vmul.f32 %v2247, %v2503
    %v2568 = vmul.f32 %v2248, %v2505
    %v2569 = vmul.f32 %v2249, %v2505
    %v2570 = vmul.f32 %v2250, %v2507
    %v2571 = vmul.f32 %v2251, %v2507
    %v2572 = vmul.f32 %v2252, %v2509
    %v2573 = vmul.f32 %v2253, %v2509
    %v2574 = vmul.f32 %v2254, %v2511
    %v2575 = vmul.f32 %v2255, %v2511
    %v2576 = vmul.f32 %v2256, %v2513
    %v2577 = vmul.f32 %v2257, %v2513
    %v2578 = vmul.f32 %v2258, %v2515
    %v2579 = vmul.f32 %v2259, %v2515
    %v2580 = vmul.f32 %v2260, %v2517
    %v2581 = vmul.f32 %v2261, %v2517
    %v2582 = vmul.f32 %v2262, %v2519
    %v2583 = vmul.f32 %v2263, %v2519
    %v2584 = vmul.f32 %v2264, %v2521
    %v2585 = vmul.f32 %v2265, %v2521
    %v2586 = vround.ne.pseudo %v2522
    %v2587 = vround.ne.pseudo %v2523
    %v2588 = vround.ne.pseudo %v2524
    %v2589 = vround.ne.pseudo %v2525
    %v2590 = vround.ne.pseudo %v2526
    %v2591 = vround.ne.pseudo %v2527
    %v2592 = vround.ne.pseudo %v2528
    %v2593 = vround.ne.pseudo %v2529
    %v2594 = vround.ne.pseudo %v2530
    %v2595 = vround.ne.pseudo %v2531
    %v2596 = vround.ne.pseudo %v2532
    %v2597 = vround.ne.pseudo %v2533
    %v2598 = vround.ne.pseudo %v2534
    %v2599 = vround.ne.pseudo %v2535
    %v2600 = vround.ne.pseudo %v2536
    %v2601 = vround.ne.pseudo %v2537
    %v2602 = vround.ne.pseudo %v2538
    %v2603 = vround.ne.pseudo %v2539
    %v2604 = vround.ne.pseudo %v2540
    %v2605 = vround.ne.pseudo %v2541
    %v2606 = vround.ne.pseudo %v2542
    %v2607 = vround.ne.pseudo %v2543
    %v2608 = vround.ne.pseudo %v2544
    %v2609 = vround.ne.pseudo %v2545
    %v2610 = vround.ne.pseudo %v2546
    %v2611 = vround.ne.pseudo %v2547
    %v2612 = vround.ne.pseudo %v2548
    %v2613 = vround.ne.pseudo %v2549
    %v2614 = vround.ne.pseudo %v2550
    %v2615 = vround.ne.pseudo %v2551
    %v2616 = vround.ne.pseudo %v2552
    %v2617 = vround.ne.pseudo %v2553
    %v2618 = vround.ne.pseudo %v2554
    %v2619 = vround.ne.pseudo %v2555
    %v2620 = vround.ne.pseudo %v2556
    %v2621 = vround.ne.pseudo %v2557
    %v2622 = vround.ne.pseudo %v2558
    %v2623 = vround.ne.pseudo %v2559
    %v2624 = vround.ne.pseudo %v2560
    %v2625 = vround.ne.pseudo %v2561
    %v2626 = vround.ne.pseudo %v2562
    %v2627 = vround.ne.pseudo %v2563
    %v2628 = vround.ne.pseudo %v2564
    %v2629 = vround.ne.pseudo %v2565
    %v2630 = vround.ne.pseudo %v2566
    %v2631 = vround.ne.pseudo %v2567
    %v2632 = vround.ne.pseudo %v2568
    %v2633 = vround.ne.pseudo %v2569
    %v2634 = vround.ne.pseudo %v2570
    %v2635 = vround.ne.pseudo %v2571
    %v2636 = vround.ne.pseudo %v2572
    %v2637 = vround.ne.pseudo %v2573
    %v2638 = vround.ne.pseudo %v2574
    %v2639 = vround.ne.pseudo %v2575
    %v2640 = vround.ne.pseudo %v2576
    %v2641 = vround.ne.pseudo %v2577
    %v2642 = vround.ne.pseudo %v2578
    %v2643 = vround.ne.pseudo %v2579
    %v2644 = vround.ne.pseudo %v2580
    %v2645 = vround.ne.pseudo %v2581
    %v2646 = vround.ne.pseudo %v2582
    %v2647 = vround.ne.pseudo %v2583
    %v2648 = vround.ne.pseudo %v2584
    %v2649 = vround.ne.pseudo %v2585
    %v2650 = vmax.f32 %v2586, -127.0
    %v2651 = vmax.f32 %v2587, -127.0
    %v2652 = vmax.f32 %v2588, -127.0
    %v2653 = vmax.f32 %v2589, -127.0
    %v2654 = vmax.f32 %v2590, -127.0
    %v2655 = vmax.f32 %v2591, -127.0
    %v2656 = vmax.f32 %v2592, -127.0
    %v2657 = vmax.f32 %v2593, -127.0
    %v2658 = vmax.f32 %v2594, -127.0
    %v2659 = vmax.f32 %v2595, -127.0
    %v2660 = vmax.f32 %v2596, -127.0
    %v2661 = vmax.f32 %v2597, -127.0
    %v2662 = vmax.f32 %v2598, -127.0
    %v2663 = vmax.f32 %v2599, -127.0
    %v2664 = vmax.f32 %v2600, -127.0
    %v2665 = vmax.f32 %v2601, -127.0
    %v2666 = vmax.f32 %v2602, -127.0
    %v2667 = vmax.f32 %v2603, -127.0
    %v2668 = vmax.f32 %v2604, -127.0
    %v2669 = vmax.f32 %v2605, -127.0
    %v2670 = vmax.f32 %v2606, -127.0
    %v2671 = vmax.f32 %v2607, -127.0
    %v2672 = vmax.f32 %v2608, -127.0
    %v2673 = vmax.f32 %v2609, -127.0
    %v2674 = vmax.f32 %v2610, -127.0
    %v2675 = vmax.f32 %v2611, -127.0
    %v2676 = vmax.f32 %v2612, -127.0
    %v2677 = vmax.f32 %v2613, -127.0
    %v2678 = vmax.f32 %v2614, -127.0
    %v2679 = vmax.f32 %v2615, -127.0
    %v2680 = vmax.f32 %v2616, -127.0
    %v2681 = vmax.f32 %v2617, -127.0
    %v2682 = vmax.f32 %v2618, -127.0
    %v2683 = vmax.f32 %v2619, -127.0
    %v2684 = vmax.f32 %v2620, -127.0
    %v2685 = vmax.f32 %v2621, -127.0
    %v2686 = vmax.f32 %v2622, -127.0
    %v2687 = vmax.f32 %v2623, -127.0
    %v2688 = vmax.f32 %v2624, -127.0
    %v2689 = vmax.f32 %v2625, -127.0
    %v2690 = vmax.f32 %v2626, -127.0
    %v2691 = vmax.f32 %v2627, -127.0
    %v2692 = vmax.f32 %v2628, -127.0
    %v2693 = vmax.f32 %v2629, -127.0
    %v2694 = vmax.f32 %v2630, -127.0
    %v2695 = vmax.f32 %v2631, -127.0
    %v2696 = vmax.f32 %v2632, -127.0
    %v2697 = vmax.f32 %v2633, -127.0
    %v2698 = vmax.f32 %v2634, -127.0
    %v2699 = vmax.f32 %v2635, -127.0
    %v2700 = vmax.f32 %v2636, -127.0
    %v2701 = vmax.f32 %v2637, -127.0
    %v2702 = vmax.f32 %v2638, -127.0
    %v2703 = vmax.f32 %v2639, -127.0
    %v2704 = vmax.f32 %v2640, -127.0
    %v2705 = vmax.f32 %v2641, -127.0
    %v2706 = vmax.f32 %v2642, -127.0
    %v2707 = vmax.f32 %v2643, -127.0
    %v2708 = vmax.f32 %v2644, -127.0
    %v2709 = vmax.f32 %v2645, -127.0
    %v2710 = vmax.f32 %v2646, -127.0
    %v2711 = vmax.f32 %v2647, -127.0
    %v2712 = vmax.f32 %v2648, -127.0
    %v2713 = vmax.f32 %v2649, -127.0
    %v2714 = vmin.f32 %v2650, 127.0
    %v2715 = vmin.f32 %v2651, 127.0
    %v2716 = vmin.f32 %v2652, 127.0
    %v2717 = vmin.f32 %v2653, 127.0
    %v2718 = vmin.f32 %v2654, 127.0
    %v2719 = vmin.f32 %v2655, 127.0
    %v2720 = vmin.f32 %v2656, 127.0
    %v2721 = vmin.f32 %v2657, 127.0
    %v2722 = vmin.f32 %v2658, 127.0
    %v2723 = vmin.f32 %v2659, 127.0
    %v2724 = vmin.f32 %v2660, 127.0
    %v2725 = vmin.f32 %v2661, 127.0
    %v2726 = vmin.f32 %v2662, 127.0
    %v2727 = vmin.f32 %v2663, 127.0
    %v2728 = vmin.f32 %v2664, 127.0
    %v2729 = vmin.f32 %v2665, 127.0
    %v2730 = vmin.f32 %v2666, 127.0
    %v2731 = vmin.f32 %v2667, 127.0
    %v2732 = vmin.f32 %v2668, 127.0
    %v2733 = vmin.f32 %v2669, 127.0
    %v2734 = vmin.f32 %v2670, 127.0
    %v2735 = vmin.f32 %v2671, 127.0
    %v2736 = vmin.f32 %v2672, 127.0
    %v2737 = vmin.f32 %v2673, 127.0
    %v2738 = vmin.f32 %v2674, 127.0
    %v2739 = vmin.f32 %v2675, 127.0
    %v2740 = vmin.f32 %v2676, 127.0
    %v2741 = vmin.f32 %v2677, 127.0
    %v2742 = vmin.f32 %v2678, 127.0
    %v2743 = vmin.f32 %v2679, 127.0
    %v2744 = vmin.f32 %v2680, 127.0
    %v2745 = vmin.f32 %v2681, 127.0
    %v2746 = vmin.f32 %v2682, 127.0
    %v2747 = vmin.f32 %v2683, 127.0
    %v2748 = vmin.f32 %v2684, 127.0
    %v2749 = vmin.f32 %v2685, 127.0
    %v2750 = vmin.f32 %v2686, 127.0
    %v2751 = vmin.f32 %v2687, 127.0
    %v2752 = vmin.f32 %v2688, 127.0
    %v2753 = vmin.f32 %v2689, 127.0
    %v2754 = vmin.f32 %v2690, 127.0
    %v2755 = vmin.f32 %v2691, 127.0
    %v2756 = vmin.f32 %v2692, 127.0
    %v2757 = vmin.f32 %v2693, 127.0
    %v2758 = vmin.f32 %v2694, 127.0
    %v2759 = vmin.f32 %v2695, 127.0
    %v2760 = vmin.f32 %v2696, 127.0
    %v2761 = vmin.f32 %v2697, 127.0
    %v2762 = vmin.f32 %v2698, 127.0
    %v2763 = vmin.f32 %v2699, 127.0
    %v2764 = vmin.f32 %v2700, 127.0
    %v2765 = vmin.f32 %v2701, 127.0
    %v2766 = vmin.f32 %v2702, 127.0
    %v2767 = vmin.f32 %v2703, 127.0
    %v2768 = vmin.f32 %v2704, 127.0
    %v2769 = vmin.f32 %v2705, 127.0
    %v2770 = vmin.f32 %v2706, 127.0
    %v2771 = vmin.f32 %v2707, 127.0
    %v2772 = vmin.f32 %v2708, 127.0
    %v2773 = vmin.f32 %v2709, 127.0
    %v2774 = vmin.f32 %v2710, 127.0
    %v2775 = vmin.f32 %v2711, 127.0
    %v2776 = vmin.f32 %v2712, 127.0
    %v2777 = vmin.f32 %v2713, 127.0
    %v2778 = vtrunc.f32 %v2714
    %v2779 = vtrunc.f32 %v2715
    %v2780 = vtrunc.f32 %v2716
    %v2781 = vtrunc.f32 %v2717
    %v2782 = vtrunc.f32 %v2718
    %v2783 = vtrunc.f32 %v2719
    %v2784 = vtrunc.f32 %v2720
    %v2785 = vtrunc.f32 %v2721
    %v2786 = vtrunc.f32 %v2722
    %v2787 = vtrunc.f32 %v2723
    %v2788 = vtrunc.f32 %v2724
    %v2789 = vtrunc.f32 %v2725
    %v2790 = vtrunc.f32 %v2726
    %v2791 = vtrunc.f32 %v2727
    %v2792 = vtrunc.f32 %v2728
    %v2793 = vtrunc.f32 %v2729
    %v2794 = vtrunc.f32 %v2730
    %v2795 = vtrunc.f32 %v2731
    %v2796 = vtrunc.f32 %v2732
    %v2797 = vtrunc.f32 %v2733
    %v2798 = vtrunc.f32 %v2734
    %v2799 = vtrunc.f32 %v2735
    %v2800 = vtrunc.f32 %v2736
    %v2801 = vtrunc.f32 %v2737
    %v2802 = vtrunc.f32 %v2738
    %v2803 = vtrunc.f32 %v2739
    %v2804 = vtrunc.f32 %v2740
    %v2805 = vtrunc.f32 %v2741
    %v2806 = vtrunc.f32 %v2742
    %v2807 = vtrunc.f32 %v2743
    %v2808 = vtrunc.f32 %v2744
    %v2809 = vtrunc.f32 %v2745
    %v2810 = vtrunc.f32 %v2746
    %v2811 = vtrunc.f32 %v2747
    %v2812 = vtrunc.f32 %v2748
    %v2813 = vtrunc.f32 %v2749
    %v2814 = vtrunc.f32 %v2750
    %v2815 = vtrunc.f32 %v2751
    %v2816 = vtrunc.f32 %v2752
    %v2817 = vtrunc.f32 %v2753
    %v2818 = vtrunc.f32 %v2754
    %v2819 = vtrunc.f32 %v2755
    %v2820 = vtrunc.f32 %v2756
    %v2821 = vtrunc.f32 %v2757
    %v2822 = vtrunc.f32 %v2758
    %v2823 = vtrunc.f32 %v2759
    %v2824 = vtrunc.f32 %v2760
    %v2825 = vtrunc.f32 %v2761
    %v2826 = vtrunc.f32 %v2762
    %v2827 = vtrunc.f32 %v2763
    %v2828 = vtrunc.f32 %v2764
    %v2829 = vtrunc.f32 %v2765
    %v2830 = vtrunc.f32 %v2766
    %v2831 = vtrunc.f32 %v2767
    %v2832 = vtrunc.f32 %v2768
    %v2833 = vtrunc.f32 %v2769
    %v2834 = vtrunc.f32 %v2770
    %v2835 = vtrunc.f32 %v2771
    %v2836 = vtrunc.f32 %v2772
    %v2837 = vtrunc.f32 %v2773
    %v2838 = vtrunc.f32 %v2774
    %v2839 = vtrunc.f32 %v2775
    %v2840 = vtrunc.f32 %v2776
    %v2841 = vtrunc.f32 %v2777
    %v2842 = vpack.c.f32.eXmY %v2778, %v2780, 312
    %v2846 = vpack.c.f32.eXmY %v2782, %v2784, 312
    %v2850 = vpack.c.b8 %v2846, %v2842
    %v2852 = vpack.c.f32.eXmY %v2779, %v2781, 312
    %v2856 = vpack.c.f32.eXmY %v2783, %v2785, 312
    %v2860 = vpack.c.b8 %v2856, %v2852
    %v2862 = vpack.c.f32.eXmY %v2786, %v2788, 312
    %v2866 = vpack.c.f32.eXmY %v2790, %v2792, 312
    %v2870 = vpack.c.b8 %v2866, %v2862
    %v2872 = vpack.c.f32.eXmY %v2787, %v2789, 312
    %v2876 = vpack.c.f32.eXmY %v2791, %v2793, 312
    %v2880 = vpack.c.b8 %v2876, %v2872
    %v2882 = vpack.c.f32.eXmY %v2794, %v2796, 312
    %v2886 = vpack.c.f32.eXmY %v2798, %v2800, 312
    %v2890 = vpack.c.b8 %v2886, %v2882
    %v2892 = vpack.c.f32.eXmY %v2795, %v2797, 312
    %v2896 = vpack.c.f32.eXmY %v2799, %v2801, 312
    %v2900 = vpack.c.b8 %v2896, %v2892
    %v2902 = vpack.c.f32.eXmY %v2802, %v2804, 312
    %v2906 = vpack.c.f32.eXmY %v2806, %v2808, 312
    %v2910 = vpack.c.b8 %v2906, %v2902
    %v2912 = vpack.c.f32.eXmY %v2803, %v2805, 312
    %v2916 = vpack.c.f32.eXmY %v2807, %v2809, 312
    %v2920 = vpack.c.b8 %v2916, %v2912
    %v2922 = vpack.c.f32.eXmY %v2810, %v2812, 312
    %v2926 = vpack.c.f32.eXmY %v2814, %v2816, 312
    %v2930 = vpack.c.b8 %v2926, %v2922
    %v2932 = vpack.c.f32.eXmY %v2811, %v2813, 312
    %v2936 = vpack.c.f32.eXmY %v2815, %v2817, 312
    %v2940 = vpack.c.b8 %v2936, %v2932
    %v2942 = vpack.c.f32.eXmY %v2818, %v2820, 312
    %v2946 = vpack.c.f32.eXmY %v2822, %v2824, 312
    %v2950 = vpack.c.b8 %v2946, %v2942
    %v2952 = vpack.c.f32.eXmY %v2819, %v2821, 312
    %v2956 = vpack.c.f32.eXmY %v2823, %v2825, 312
    %v2960 = vpack.c.b8 %v2956, %v2952
    %v2962 = vpack.c.f32.eXmY %v2826, %v2828, 312
    %v2966 = vpack.c.f32.eXmY %v2830, %v2832, 312
    %v2970 = vpack.c.b8 %v2966, %v2962
    %v2972 = vpack.c.f32.eXmY %v2827, %v2829, 312
    %v2976 = vpack.c.f32.eXmY %v2831, %v2833, 312
    %v2980 = vpack.c.b8 %v2976, %v2972
    %v2982 = vpack.c.f32.eXmY %v2834, %v2836, 312
    %v2986 = vpack.c.f32.eXmY %v2838, %v2840, 312
    %v2990 = vpack.c.b8 %v2986, %v2982
    %v2992 = vpack.c.f32.eXmY %v2835, %v2837, 312
    %v2996 = vpack.c.f32.eXmY %v2839, %v2841, 312
    %v3000 = vpack.c.b8 %v2996, %v2992
    %3002 = vst [vmem:[#allocation7] sm:$0xff] %v2850
    %3003 = vst [vmem:[#allocation7 + $0x8] sm:$0xff] %v2860
    %3004 = vst [vmem:[#allocation7 + $0x10] sm:$0xff] %v2870
    %3005 = vst [vmem:[#allocation7 + $0x18] sm:$0xff] %v2880
    %3006 = vst [vmem:[#allocation7 + $0x20] sm:$0xff] %v2890
    %3007 = vst [vmem:[#allocation7 + $0x28] sm:$0xff] %v2900
    %3008 = vst [vmem:[#allocation7 + $0x30] sm:$0xff] %v2910
    %3009 = vst [vmem:[#allocation7 + $0x38] sm:$0xff] %v2920
    %3010 = vst [vmem:[#allocation7 + $0x40] sm:$0xff] %v2930
    %3011 = vst [vmem:[#allocation7 + $0x48] sm:$0xff] %v2940
    %3012 = vst [vmem:[#allocation7 + $0x50] sm:$0xff] %v2950
    %3013 = vst [vmem:[#allocation7 + $0x58] sm:$0xff] %v2960
    %3014 = vst [vmem:[#allocation7 + $0x60] sm:$0xff] %v2970
    %3015 = vst [vmem:[#allocation7 + $0x68] sm:$0xff] %v2980
    %3016 = vst [vmem:[#allocation7 + $0x70] sm:$0xff] %v2990
    %3017 = vst [vmem:[#allocation7 + $0x78] sm:$0xff] %v3000
    %v3018 = vmul.f32 %v2426, 0.007874016
    %v3019 = vmul.f32 %v2427, 0.007874016
    %v3020 = vmul.f32 %v2428, 0.007874016
    %v3021 = vmul.f32 %v2429, 0.007874016
    %v3022 = vmul.f32 %v2430, 0.007874016
    %v3023 = vmul.f32 %v2431, 0.007874016
    %v3024 = vmul.f32 %v2432, 0.007874016
    %v3025 = vmul.f32 %v2433, 0.007874016
    %v3026 = vmul.f32 %v2434, 0.007874016
    %v3027 = vmul.f32 %v2435, 0.007874016
    %v3028 = vmul.f32 %v2436, 0.007874016
    %v3029 = vmul.f32 %v2437, 0.007874016
    %v3030 = vmul.f32 %v2438, 0.007874016
    %v3031 = vmul.f32 %v2439, 0.007874016
    %v3032 = vmul.f32 %v2440, 0.007874016
    %v3033 = vmul.f32 %v2441, 0.007874016
    %v3034 = vmul.f32 %v2442, 0.007874016
    %v3035 = vmul.f32 %v2443, 0.007874016
    %v3036 = vmul.f32 %v2444, 0.007874016
    %v3037 = vmul.f32 %v2445, 0.007874016
    %v3038 = vmul.f32 %v2446, 0.007874016
    %v3039 = vmul.f32 %v2447, 0.007874016
    %v3040 = vmul.f32 %v2448, 0.007874016
    %v3041 = vmul.f32 %v2449, 0.007874016
    %v3042 = vmul.f32 %v2450, 0.007874016
    %v3043 = vmul.f32 %v2451, 0.007874016
    %v3044 = vmul.f32 %v2452, 0.007874016
    %v3045 = vmul.f32 %v2453, 0.007874016
    %v3046 = vmul.f32 %v2454, 0.007874016
    %v3047 = vmul.f32 %v2455, 0.007874016
    %v3048 = vmul.f32 %v2456, 0.007874016
    %v3049 = vmul.f32 %v2457, 0.007874016
    %vm3050 = vcmask 7168
    %3051 = vst.msk [vmem:[%s4] sm:$0xff] %vm3050, %v3018
    %3052 = vst.msk [vmem:[%s4 + $0x8] sm:$0xff] %vm3050, %v3019
    %3053 = vst.msk [vmem:[%s4 + $0x10] sm:$0xff] %vm3050, %v3020
    %3054 = vst.msk [vmem:[%s4 + $0x18] sm:$0xff] %vm3050, %v3021
    %3055 = vst.msk [vmem:[%s4 + $0x20] sm:$0xff] %vm3050, %v3022
    %3056 = vst.msk [vmem:[%s4 + $0x28] sm:$0xff] %vm3050, %v3023
    %3057 = vst.msk [vmem:[%s4 + $0x30] sm:$0xff] %vm3050, %v3024
    %3058 = vst.msk [vmem:[%s4 + $0x38] sm:$0xff] %vm3050, %v3025
    %3059 = vst.msk [vmem:[%s4 + $0x40] sm:$0xff] %vm3050, %v3026
    %3060 = vst.msk [vmem:[%s4 + $0x48] sm:$0xff] %vm3050, %v3027
    %3061 = vst.msk [vmem:[%s4 + $0x50] sm:$0xff] %vm3050, %v3028
    %3062 = vst.msk [vmem:[%s4 + $0x58] sm:$0xff] %vm3050, %v3029
    %3063 = vst.msk [vmem:[%s4 + $0x60] sm:$0xff] %vm3050, %v3030
    %3064 = vst.msk [vmem:[%s4 + $0x68] sm:$0xff] %vm3050, %v3031
    %3065 = vst.msk [vmem:[%s4 + $0x70] sm:$0xff] %vm3050, %v3032
    %3066 = vst.msk [vmem:[%s4 + $0x78] sm:$0xff] %vm3050, %v3033
    %3067 = vst.msk [vmem:[%s4 + $0x80] sm:$0xff] %vm3050, %v3034
    %3068 = vst.msk [vmem:[%s4 + $0x88] sm:$0xff] %vm3050, %v3035
    %3069 = vst.msk [vmem:[%s4 + $0x90] sm:$0xff] %vm3050, %v3036
    %3070 = vst.msk [vmem:[%s4 + $0x98] sm:$0xff] %vm3050, %v3037
    %3071 = vst.msk [vmem:[%s4 + $0xa0] sm:$0xff] %vm3050, %v3038
    %3072 = vst.msk [vmem:[%s4 + $0xa8] sm:$0xff] %vm3050, %v3039
    %3073 = vst.msk [vmem:[%s4 + $0xb0] sm:$0xff] %vm3050, %v3040
    %3074 = vst.msk [vmem:[%s4 + $0xb8] sm:$0xff] %vm3050, %v3041
    %3075 = vst.msk [vmem:[%s4 + $0xc0] sm:$0xff] %vm3050, %v3042
    %3076 = vst.msk [vmem:[%s4 + $0xc8] sm:$0xff] %vm3050, %v3043
    %3077 = vst.msk [vmem:[%s4 + $0xd0] sm:$0xff] %vm3050, %v3044
    %3078 = vst.msk [vmem:[%s4 + $0xd8] sm:$0xff] %vm3050, %v3045
    %3079 = vst.msk [vmem:[%s4 + $0xe0] sm:$0xff] %vm3050, %v3046
    %3080 = vst.msk [vmem:[%s4 + $0xe8] sm:$0xff] %vm3050, %v3047
    %3081 = vst.msk [vmem:[%s4 + $0xf0] sm:$0xff] %vm3050, %v3048
    %3082 = vst.msk [vmem:[%s4 + $0xf8] sm:$0xff] %vm3050, %v3049
    // Predicated region
    $region22: #{tpu_custom_call.1} parent=1 // pred_check
      _
    $region23: #{tpu_custom_call.1} parent=1 // pred_check_branch
      %3084 = sbr.rel (0) target = $region25
    $region24: #{tpu_custom_call.1} parent=1 // pred_region
      %s3086 = ssub.s32 2048, 2048
      %3087 = vsyncadd [#allocation4], %s3086
      %s3088 = sshll.u32 [#allocation7], 4
      %s3089 = int_to_ptr.vmem [resolvable:$true] %s3088
      %3094 = dma.vmem_to_hbm [thread:$0]  %s3089, 2048, %s3, [#allocation4], 256, 256, 16
    $region25: #{tpu_custom_call.1} parent=1 // pred_fallthru
      _
    // Predicated region
    $region26: #{tpu_custom_call.1} parent=1 // pred_check
      _
    $region27: #{tpu_custom_call.1} parent=1 // pred_check_branch
      %3096 = sbr.rel (0) target = $region29
    $region28: #{tpu_custom_call.1} parent=1 // pred_region
      _
    $region29: #{tpu_custom_call.1} parent=1 // pred_fallthru
      _
    // Predicated region
    $region30: #{tpu_custom_call.1} parent=1 // pred_check
      _
    $region31: #{tpu_custom_call.1} parent=1 // pred_check_branch
      %3098 = sbr.rel (0) target = $region33
    $region32: #{tpu_custom_call.1} parent=1 // pred_region
      %3099 = dma.done [#allocation4], 2048
    $region33: #{tpu_custom_call.1} parent=1 // pred_fallthru
      _
    // Predicated region
    $region34: #{tpu_custom_call.1} parent=1 // pred_check
      _
    $region35: #{tpu_custom_call.1} parent=1 // pred_check_branch
      %3101 = sbr.rel (0) target = $region37
    $region36: #{tpu_custom_call.1} parent=1 // pred_region
      _
    $region37: #{tpu_custom_call.1} parent=1 // pred_fallthru
      _
    %3102 = vsyncpa [#allocation3], 1
    %3103 = vsyncpa [#allocation6], 1
    %3104 = vsyncpa [#allocation4], 1

</llo_original>
